<compile_context>
chip_gen: v7x
topology: tpu7x:2x2x1
jax: 0.10.0
libtpu: 0.0.40
codegen_flags: <defaults>
</compile_context>

<pallas_src>
import functools
import math

import jax
import jax.numpy as jnp
from jax.experimental import pallas as pl
from jax.experimental.pallas import tpu as pltpu

GRU_ALPHA = 0.0               # ScriptGRU.alpha (compile-time zero -> folded away)
GRU_ALPHAM1 = GRU_ALPHA - 1.0
TRACE_ALPHA = 0.9             # ScriptEGRUD.alpha (output trace only)


def _round_up(x, m):
    return ((x + m - 1) // m) * m


def _egrud_recurrent_kernel(hidden_size, t_chunk, seq_len, pad_w,
                            use_output_trace, mm_dtype,
                            xres_ref, ut_ref, bu_ref, thr_ref,
                            out_ref,
                            h_sc, c_sc, tr_sc):
    """Sequential recurrence over one (batch_tile, time_chunk) block.

    xres_ref : (T_CHUNK, B_TILE, 3H) precomputed x @ W.T + b_w
    ut_ref   : (H, 3H)   U.T (weight-resident, possibly bf16)
    bu_ref   : (1, 3H)   b_u
    thr_ref  : (1, H)    spike threshold
    out_ref  : (T_CHUNK, B_TILE, PAD_W) fused [h | c | o | tr | i_u | i_r | i_c | 0-pad]
    """
    H = hidden_size
    g = pl.program_id(1)                       # time-chunk index (sequential axis)
    last_chunk = (seq_len - 1) // t_chunk      # chunk containing the true last step
    last_local = (seq_len - 1) % t_chunk       # its offset inside that chunk

    @pl.when(g == 0)
    def _():
        # Zero initial states at the start of every batch tile's time sweep.
        # (output_gate(c=0, o=0, thr) in the PyTorch module leaves them zero.)
        h_sc[...] = jnp.zeros_like(h_sc)
        c_sc[...] = jnp.zeros_like(c_sc)
        tr_sc[...] = jnp.zeros_like(tr_sc)

    # Hoisted loads (reused across the unrolled chunk).
    ut = ut_ref[...]
    bu = bu_ref[...]
    thr = thr_ref[...]

    h_prev = h_sc[...]
    c_prev = c_sc[...]
    tr_prev = tr_sc[...]

    b_tile = h_prev.shape[0]
    pad_cols = pad_w - 7 * H
    zpad = jnp.zeros((b_tile, pad_cols), jnp.float32) if pad_cols > 0 else None

    for tloc in range(t_chunk):                # static unroll; tloc is a Python int
        xres_t = xres_ref[tloc]                # (B_TILE, 3H), static-index load

        # Recurrent projection on the MXU (only matmul left inside the loop).
        h_res = jnp.dot(h_prev.astype(mm_dtype), ut,
                        preferred_element_type=jnp.float32) + bu

        x_u, x_r, x_c = xres_t[:, 0:H], xres_t[:, H:2 * H], xres_t[:, 2 * H:3 * H]
        h_u, h_r, h_c = h_res[:, 0:H], h_res[:, H:2 * H], h_res[:, 2 * H:3 * H]

        # alpha == 0 path removed: i_* = (x_* + ...) directly, no i_prev carry.
        i_u = x_u + h_u
        i_r = x_r + h_r
        i_c = x_c + jax.nn.sigmoid(i_r) * h_c

        u = jax.nn.sigmoid(i_u)
        z = jnp.tanh(i_c)
        c_new = u * c_prev + (1.0 - u) * z

        # SpikeFunction.forward == Heaviside(c - thr); backward params N/A here.
        o_t = jnp.where(c_new - thr > 0.0, 1.0, 0.0)
        h_t = o_t * c_new                       # h uses the pre-reset cell state
        c_reset = c_new - o_t * thr             # soft reset (carried state)

        # Emitted c: reset everywhere except at the true last global step.
        if tloc == last_local:
            c_emit = jnp.where(g == last_chunk, c_new, c_reset)
        else:
            c_emit = c_reset

        if use_output_trace:
            tr_new = TRACE_ALPHA * tr_prev + (1.0 - TRACE_ALPHA) * h_t
        else:
            tr_new = tr_prev

        # One fused, lane-dense (128-multiple wide) store per timestep.
        parts = [h_t, c_emit, o_t, tr_new, i_u, i_r, i_c]
        if zpad is not None:
            parts.append(zpad)
        out_ref[tloc] = jnp.concatenate(parts, axis=-1)

        h_prev, c_prev, tr_prev = h_t, c_reset, tr_new

    # Carry state to the next time chunk of this batch tile.
    h_sc[...] = h_prev
    c_sc[...] = c_prev
    tr_sc[...] = tr_prev


def egrud_forward(x, W, U, b_w, b_u, thr, use_output_trace=False,
                  use_bf16_matmul=False, t_chunk=None):
    """x: (batch, seq, input) float32, like the PyTorch module (batch_first).

    Returns (hidden_states (B,S,H), (c, o, i, tr) each with a leading layer dim).
    """
    B, S, I = x.shape
    H3 = W.shape[0]
    H = H3 // 3

    mm_dtype = jnp.bfloat16 if use_bf16_matmul else jnp.float32

    # ---- hoisted time-parallel input projection: one big matmul over S*B rows
    wt = jnp.transpose(W).astype(mm_dtype)                           # (I, 3H)
    xres = jnp.einsum('bsi,ih->bsh', x.astype(mm_dtype), wt,
                      preferred_element_type=jnp.float32)
    xres = xres + b_w.reshape(1, 1, H3).astype(jnp.float32)          # (B, S, 3H)
    xres = jnp.transpose(xres, (1, 0, 2))                            # (S, B, 3H)

    # ---- padding: batch to sublane multiples / <=128 tiles, time to chunk size
    if t_chunk is None:
        t_chunk = min(S, 16)
    if B <= 128:
        b_pad = _round_up(B, 8)
        b_tile = b_pad
    else:
        b_pad = _round_up(B, 128)
        b_tile = 128
    s_pad = _round_up(S, t_chunk)
    xres = jnp.pad(xres, ((0, s_pad - S), (0, b_pad - B), (0, 0)))

    ut = jnp.transpose(U).astype(mm_dtype)                           # (H, 3H)
    bu = b_u.reshape(1, H3).astype(jnp.float32)
    thr2 = jnp.broadcast_to(thr.reshape(1, -1), (1, H)).astype(jnp.float32)

    pad_w = _round_up(7 * H, 128)     # fused output width (lane-dense)
    nb = b_pad // b_tile
    nt = s_pad // t_chunk

    kernel = functools.partial(_egrud_recurrent_kernel, H, t_chunk, S, pad_w,
                               use_output_trace, mm_dtype)

    grid_spec = pltpu.PrefetchScalarGridSpec(
        num_scalar_prefetch=0,
        grid=(nb, nt),                       # (batch tiles: parallel, time: sequential)
        in_specs=[
            pl.BlockSpec((t_chunk, b_tile, H3), lambda b, g: (g, b, 0)),  # x @ W.T + b_w
            pl.BlockSpec((H, H3), lambda b, g: (0, 0)),                   # U.T (resident)
            pl.BlockSpec((1, H3), lambda b, g: (0, 0)),                   # b_u
            pl.BlockSpec((1, H), lambda b, g: (0, 0)),                    # thr
        ],
        out_specs=pl.BlockSpec((t_chunk, b_tile, pad_w), lambda b, g: (g, b, 0)),
        scratch_shapes=[
            pltpu.VMEM((b_tile, H), jnp.float32),    # h carry
            pltpu.VMEM((b_tile, H), jnp.float32),    # c carry
            pltpu.VMEM((b_tile, H), jnp.float32),    # output trace carry
        ],
    )

    # NOTE: for large H (e.g. 3H*H f32 ~ many MiB) set
    # pltpu.CompilerParams(vmem_limit_bytes=...) and/or pass bf16 weights so the
    # resident U.T (double-buffered by BlockSpec) fits v7x's 64 MiB / v5e's
    # 16 MiB scoped VMEM.  At these demo sizes the defaults are ample.
    out = pl.pallas_call(
        kernel,
        out_shape=jax.ShapeDtypeStruct((s_pad, b_pad, pad_w), jnp.float32),
        grid_spec=grid_spec,
        compiler_params=pltpu.CompilerParams(
            dimension_semantics=("parallel", "arbitrary")),
    )(xres, ut, bu, thr2)

    out = out[:S, :B]                                   # strip time/batch padding
    hs = out[..., 0:H]
    c = out[..., H:2 * H]
    o = out[..., 2 * H:3 * H]
    tr = out[..., 3 * H:4 * H]
    i = out[..., 4 * H:7 * H]

    hidden_states = jnp.transpose(hs, (1, 0, 2))        # (B, S, H), batch-first
    return hidden_states, (c[None], o[None], i[None], tr[None])


def egrud_reference(x, W, U, b_w, b_u, thr, use_output_trace=False):
    """Pure-JAX reference mirroring the PyTorch loop exactly."""
    B, S, _ = x.shape
    H = W.shape[0] // 3
    h_t = jnp.zeros((B, H), jnp.float32)
    c_t = jnp.zeros((B, H), jnp.float32)
    i_t = jnp.zeros((B, 3 * H), jnp.float32)
    tr_t = jnp.zeros((B, H), jnp.float32)
    hs, cs, os_, is_, trs = [], [], [], [], []
    for t in range(S):
        x_res = x[:, t, :] @ W.T + b_w
        h_res = h_t @ U.T + b_u
        x_u, x_r, x_c = jnp.split(x_res, 3, axis=-1)
        h_u, h_r, h_c = jnp.split(h_res, 3, axis=-1)
        iu_p, ir_p, ic_p = jnp.split(i_t, 3, axis=-1)
        i_r = GRU_ALPHA * ir_p - GRU_ALPHAM1 * (x_r + h_r)
        r = jax.nn.sigmoid(i_r)
        i_u = GRU_ALPHA * iu_p - GRU_ALPHAM1 * (x_u + h_u)
        u = jax.nn.sigmoid(i_u)
        i_c = GRU_ALPHA * ic_p - GRU_ALPHAM1 * (x_c + r * h_c)
        z = jnp.tanh(i_c)
        c_t = u * c_t + (1.0 - u) * z
        i_t = jnp.concatenate([i_u, i_r, i_c], axis=-1)
        o_t = (c_t - thr[None, :] > 0.0).astype(jnp.float32)
        if t < S - 1:
            h_t = c_t * o_t
            c_t = c_t - o_t * thr[None, :]
        else:
            h_t = o_t * c_t
        if use_output_trace:
            tr_t = TRACE_ALPHA * tr_t + (1.0 - TRACE_ALPHA) * h_t
        hs.append(h_t); cs.append(c_t); os_.append(o_t); is_.append(i_t); trs.append(tr_t)
    hs = jnp.stack(hs, 0)
    return (jnp.transpose(hs, (1, 0, 2)),
            (jnp.stack(cs, 0)[None], jnp.stack(os_, 0)[None],
             jnp.stack(is_, 0)[None], jnp.stack(trs, 0)[None]))


def init_params(key, input_size, hidden_size, thr_init_scale=1.0):
    """Deterministic param init matching the module's __init__ (rand_vector thr)."""
    kW, kU, kbw, kbu, kthr = jax.random.split(key, 5)
    H3 = 3 * hidden_size
    lim_w = math.sqrt(6.0 / (input_size + H3))        # xavier_uniform_
    W = jax.random.uniform(kW, (H3, input_size), jnp.float32, -lim_w, lim_w)
    lim_u = math.sqrt(6.0 / (hidden_size + H3))
    U = jax.random.uniform(kU, (H3, hidden_size), jnp.float32, -lim_u, lim_u)
    b_w = jax.random.uniform(kbw, (H3,), jnp.float32, 0.0, 1.0)   # nn.init.uniform_ default
    b_u = jax.random.uniform(kbu, (H3,), jnp.float32, 0.0, 1.0)
    thr_reparam = thr_init_scale * math.sqrt(2.0) * jax.random.normal(
        kthr, (hidden_size,), jnp.float32)                        # rand_vector init
    thr = jax.nn.sigmoid(thr_reparam)
    return W, U, b_w, b_u, thr


if __name__ == "__main__":
    batch, seq_len, input_size, hidden_size = 2, 8, 16, 32

    key = jax.random.PRNGKey(0)
    k_x, k_p = jax.random.split(key)
    x = jax.random.normal(k_x, (batch, seq_len, input_size), jnp.float32)
    W, U, b_w, b_u, thr = init_params(k_p, input_size, hidden_size)

    # --- f32 path, no trace ---
    hs, (c, o, i, tr) = egrud_forward(x, W, U, b_w, b_u, thr, use_output_trace=False)
    jax.block_until_ready((hs, c, o, i, tr))
    hs_r, (c_r, o_r, i_r, tr_r) = egrud_reference(x, W, U, b_w, b_u, thr)
    assert hs.shape == (batch, seq_len, hidden_size)
    assert c.shape == (1, seq_len, batch, hidden_size)
    assert i.shape == (1, seq_len, batch, 3 * hidden_size)
    for got, want in ((hs, hs_r), (c, c_r), (o, o_r), (i, i_r), (tr, tr_r)):
        assert jnp.allclose(got, want, rtol=1e-5, atol=1e-5), "mismatch vs reference"

    # --- f32 path, with output trace ---
    hs2, outs2 = egrud_forward(x, W, U, b_w, b_u, thr, use_output_trace=True)
    hs2_r, outs2_r = egrud_reference(x, W, U, b_w, b_u, thr, use_output_trace=True)
    for got, want in ((hs2, hs2_r),) + tuple(zip(outs2, outs2_r)):
        assert jnp.allclose(got, want, rtol=1e-5, atol=1e-5), "trace mismatch vs reference"

    # --- ragged shapes: exercise batch padding + multi-chunk time + padded tail ---
    x3 = jax.random.normal(jax.random.PRNGKey(1), (3, 11, input_size), jnp.float32)
    hs3, outs3 = egrud_forward(x3, W, U, b_w, b_u, thr, t_chunk=4)
    hs3_r, outs3_r = egrud_reference(x3, W, U, b_w, b_u, thr)
    for got, want in ((hs3, hs3_r),) + tuple(zip(outs3, outs3_r)):
        assert jnp.allclose(got, want, rtol=1e-5, atol=1e-5), "ragged-shape mismatch"

    # --- bf16-weight variant (perf path for v6e/v7x MXU); spike discreteness
    #     makes tight elementwise checks inappropriate, so just run + sanity-check.
    hs_bf, outs_bf = egrud_forward(x, W, U, b_w, b_u, thr, use_bf16_matmul=True)
    jax.block_until_ready((hs_bf,) + outs_bf)
    assert hs_bf.shape == hs.shape
    assert bool(jnp.all(jnp.isfinite(hs_bf)))

    print("KERNEL_OK")
</pallas_src>

<mosaic_0001>
module attributes {stable_mosaic.version = 11 : i64} {
  func.func @_egrud_recurrent_kernel(%arg0: i32, %arg1: i32, %arg2: memref<8x8x96xf32, #tpu.memory_space<vmem>>, %arg3: memref<32x96xf32, #tpu.memory_space<vmem>>, %arg4: memref<1x96xf32, #tpu.memory_space<vmem>>, %arg5: memref<1x32xf32, #tpu.memory_space<vmem>>, %arg6: memref<8x8x256xf32, #tpu.memory_space<vmem>>, %arg7: memref<8x32xf32, #tpu.memory_space<vmem>>, %arg8: memref<8x32xf32, #tpu.memory_space<vmem>>, %arg9: memref<8x32xf32, #tpu.memory_space<vmem>>) attributes {dimension_semantics = [#tpu.dimension_semantics<parallel>, #tpu.dimension_semantics<arbitrary>], iteration_bounds = array<i64: 1, 1>, scalar_prefetch = 0 : i64, scratch_operands = 3 : i64, tpu.core_type = #tpu.core_type<tc>, window_params = [{transform_indices = @transform_0, window_bounds = array<i64: 8, 8, 96>}, {pipeline_mode = #tpu.pipeline_mode<synchronous>, transform_indices = @transform_1, window_bounds = array<i64: 32, 96>}, {pipeline_mode = #tpu.pipeline_mode<synchronous>, transform_indices = @transform_2, window_bounds = array<i64: 1, 96>}, {pipeline_mode = #tpu.pipeline_mode<synchronous>, transform_indices = @transform_3, window_bounds = array<i64: 1, 32>}, {transform_indices = @transform_4, window_bounds = array<i64: 8, 8, 256>}]} {
    %c0_i32 = arith.constant 0 : i32
    %0 = arith.cmpi eq, %arg1, %c0_i32 : i32
    %1 = arith.extui %0 : i1 to i32
    %c0_i32_0 = arith.constant 0 : i32
    %2 = arith.cmpi ne, %1, %c0_i32_0 : i32
    scf.if %2 {
      %cst_116 = arith.constant 0.000000e+00 : f32
      %383 = vector.broadcast %cst_116 : f32 to vector<8x32xf32>
      %c0_117 = arith.constant 0 : index
      %c0_118 = arith.constant 0 : index
      %384 = vector.load %arg7[%c0_117, %c0_118] : memref<8x32xf32, #tpu.memory_space<vmem>>, vector<8x32xf32>
      tpu.vector_store %arg7[%c0_117, %c0_118], %383 {strides = array<i32>} : memref<8x32xf32, #tpu.memory_space<vmem>>, vector<8x32xf32>,
      %cst_119 = arith.constant 0.000000e+00 : f32
      %385 = vector.broadcast %cst_119 : f32 to vector<8x32xf32>
      %c0_120 = arith.constant 0 : index
      %c0_121 = arith.constant 0 : index
      %386 = vector.load %arg8[%c0_120, %c0_121] : memref<8x32xf32, #tpu.memory_space<vmem>>, vector<8x32xf32>
      tpu.vector_store %arg8[%c0_120, %c0_121], %385 {strides = array<i32>} : memref<8x32xf32, #tpu.memory_space<vmem>>, vector<8x32xf32>,
      %cst_122 = arith.constant 0.000000e+00 : f32
      %387 = vector.broadcast %cst_122 : f32 to vector<8x32xf32>
      %c0_123 = arith.constant 0 : index
      %c0_124 = arith.constant 0 : index
      %388 = vector.load %arg9[%c0_123, %c0_124] : memref<8x32xf32, #tpu.memory_space<vmem>>, vector<8x32xf32>
      tpu.vector_store %arg9[%c0_123, %c0_124], %387 {strides = array<i32>} : memref<8x32xf32, #tpu.memory_space<vmem>>, vector<8x32xf32>,
    } else {
    }
    %c0 = arith.constant 0 : index
    %c0_1 = arith.constant 0 : index
    %3 = vector.load %arg3[%c0, %c0_1] : memref<32x96xf32, #tpu.memory_space<vmem>>, vector<32x96xf32>
    %c0_2 = arith.constant 0 : index
    %c0_3 = arith.constant 0 : index
    %4 = vector.load %arg4[%c0_2, %c0_3] : memref<1x96xf32, #tpu.memory_space<vmem>>, vector<1x96xf32>
    %c0_4 = arith.constant 0 : index
    %c0_5 = arith.constant 0 : index
    %5 = vector.load %arg5[%c0_4, %c0_5] : memref<1x32xf32, #tpu.memory_space<vmem>>, vector<1x32xf32>
    %c0_6 = arith.constant 0 : index
    %c0_7 = arith.constant 0 : index
    %6 = vector.load %arg7[%c0_6, %c0_7] : memref<8x32xf32, #tpu.memory_space<vmem>>, vector<8x32xf32>
    %c0_8 = arith.constant 0 : index
    %c0_9 = arith.constant 0 : index
    %7 = vector.load %arg8[%c0_8, %c0_9] : memref<8x32xf32, #tpu.memory_space<vmem>>, vector<8x32xf32>
    %c0_10 = arith.constant 0 : index
    %c0_11 = arith.constant 0 : index
    %8 = vector.load %arg9[%c0_10, %c0_11] : memref<8x32xf32, #tpu.memory_space<vmem>>, vector<8x32xf32>
    %cst = arith.constant 0.000000e+00 : f32
    %9 = vector.broadcast %cst : f32 to vector<8x32xf32>
    %c0_12 = arith.constant 0 : index
    %c0_13 = arith.constant 0 : index
    %c0_14 = arith.constant 0 : index
    %10 = vector.load %arg2[%c0_12, %c0_13, %c0_14] : memref<8x8x96xf32, #tpu.memory_space<vmem>>, vector<1x8x96xf32>
    %11 = vector.shape_cast %10 : vector<1x8x96xf32> to vector<8x96xf32>
    %cst_15 = arith.constant dense<0.000000e+00> : vector<8x96xf32>
    %12 = tpu.matmul %6, %3, %cst_15 {dimension_numbers = #tpu.dot_dimension_numbers<[1], [0], [0], [1], [0, 0, 1, 1], [], []>} : vector<8x32xf32>, vector<32x96xf32>, vector<8x96xf32> -> vector<8x96xf32>
    %13 = vector.broadcast %4 : vector<1x96xf32> to vector<8x96xf32>
    %14 = arith.addf %12, %13 : vector<8x96xf32>
    %15 = vector.extract_strided_slice %11 {offsets = [0, 0], sizes = [8, 32], strides = [1, 1]} : vector<8x96xf32> to vector<8x32xf32>
    %16 = vector.extract_strided_slice %11 {offsets = [0, 32], sizes = [8, 32], strides = [1, 1]} : vector<8x96xf32> to vector<8x32xf32>
    %17 = vector.extract_strided_slice %11 {offsets = [0, 64], sizes = [8, 32], strides = [1, 1]} : vector<8x96xf32> to vector<8x32xf32>
    %18 = vector.extract_strided_slice %14 {offsets = [0, 0], sizes = [8, 32], strides = [1, 1]} : vector<8x96xf32> to vector<8x32xf32>
    %19 = vector.extract_strided_slice %14 {offsets = [0, 32], sizes = [8, 32], strides = [1, 1]} : vector<8x96xf32> to vector<8x32xf32>
    %20 = vector.extract_strided_slice %14 {offsets = [0, 64], sizes = [8, 32], strides = [1, 1]} : vector<8x96xf32> to vector<8x32xf32>
    %21 = arith.addf %15, %18 : vector<8x32xf32>
    %22 = arith.addf %16, %19 : vector<8x32xf32>
    %23 = arith.negf %22 : vector<8x32xf32>
    %24 = math.exp %23 : vector<8x32xf32>
    %cst_16 = arith.constant 1.000000e+00 : f32
    %25 = vector.broadcast %cst_16 : f32 to vector<8x32xf32>
    %26 = arith.addf %25, %24 : vector<8x32xf32>
    %27 = arith.divf %25, %26 : vector<8x32xf32>
    %28 = arith.mulf %27, %20 : vector<8x32xf32>
    %29 = arith.addf %17, %28 : vector<8x32xf32>
    %30 = arith.negf %21 : vector<8x32xf32>
    %31 = math.exp %30 : vector<8x32xf32>
    %cst_17 = arith.constant 1.000000e+00 : f32
    %32 = vector.broadcast %cst_17 : f32 to vector<8x32xf32>
    %33 = arith.addf %32, %31 : vector<8x32xf32>
    %34 = arith.divf %32, %33 : vector<8x32xf32>
    %35 = math.tanh %29 : vector<8x32xf32>
    %36 = arith.mulf %34, %7 : vector<8x32xf32>
    %cst_18 = arith.constant 1.000000e+00 : f32
    %37 = vector.broadcast %cst_18 : f32 to vector<8x32xf32>
    %38 = arith.subf %37, %34 : vector<8x32xf32>
    %39 = arith.mulf %38, %35 : vector<8x32xf32>
    %40 = arith.addf %36, %39 : vector<8x32xf32>
    %41 = vector.broadcast %5 : vector<1x32xf32> to vector<8x32xf32>
    %42 = arith.subf %40, %41 : vector<8x32xf32>
    %cst_19 = arith.constant 0.000000e+00 : f32
    %43 = vector.broadcast %cst_19 : f32 to vector<8x32xf32>
    %44 = arith.cmpf ogt, %42, %43 : vector<8x32xf32>
    %cst_20 = arith.constant 1.000000e+00 : f32
    %cst_21 = arith.constant 0.000000e+00 : f32
    %45 = vector.broadcast %cst_20 : f32 to vector<8x32xf32>
    %46 = vector.broadcast %cst_21 : f32 to vector<8x32xf32>
    %47 = arith.select %44, %45, %46 : vector<8x32xi1>, vector<8x32xf32>
    %48 = arith.mulf %47, %40 : vector<8x32xf32>
    %49 = vector.broadcast %5 : vector<1x32xf32> to vector<8x32xf32>
    %50 = arith.mulf %47, %49 : vector<8x32xf32>
    %51 = arith.subf %40, %50 : vector<8x32xf32>
    %52 = tpu.concatenate %48, %51, %47, %8, %21, %22, %29, %9 in 1 : vector<8x32xf32>, vector<8x32xf32>, vector<8x32xf32>, vector<8x32xf32>, vector<8x32xf32>, vector<8x32xf32>, vector<8x32xf32>, vector<8x32xf32> -> vector<8x256xf32>
    %c0_22 = arith.constant 0 : index
    %c0_23 = arith.constant 0 : index
    %c0_24 = arith.constant 0 : index
    %53 = vector.load %arg6[%c0_22, %c0_23, %c0_24] : memref<8x8x256xf32, #tpu.memory_space<vmem>>, vector<1x8x256xf32>
    %54 = vector.shape_cast %53 : vector<1x8x256xf32> to vector<8x256xf32>
    %55 = vector.shape_cast %52 : vector<8x256xf32> to vector<1x8x256xf32>
    tpu.vector_store %arg6[%c0_22, %c0_23, %c0_24], %55 {strides = array<i32>} : memref<8x8x256xf32, #tpu.memory_space<vmem>>, vector<1x8x256xf32>,
    %c1 = arith.constant 1 : index
    %c0_25 = arith.constant 0 : index
    %c0_26 = arith.constant 0 : index
    %56 = vector.load %arg2[%c1, %c0_25, %c0_26] : memref<8x8x96xf32, #tpu.memory_space<vmem>>, vector<1x8x96xf32>
    %57 = vector.shape_cast %56 : vector<1x8x96xf32> to vector<8x96xf32>
    %cst_27 = arith.constant dense<0.000000e+00> : vector<8x96xf32>
    %58 = tpu.matmul %48, %3, %cst_27 {dimension_numbers = #tpu.dot_dimension_numbers<[1], [0], [0], [1], [0, 0, 1, 1], [], []>} : vector<8x32xf32>, vector<32x96xf32>, vector<8x96xf32> -> vector<8x96xf32>
    %59 = vector.broadcast %4 : vector<1x96xf32> to vector<8x96xf32>
    %60 = arith.addf %58, %59 : vector<8x96xf32>
    %61 = vector.extract_strided_slice %57 {offsets = [0, 0], sizes = [8, 32], strides = [1, 1]} : vector<8x96xf32> to vector<8x32xf32>
    %62 = vector.extract_strided_slice %57 {offsets = [0, 32], sizes = [8, 32], strides = [1, 1]} : vector<8x96xf32> to vector<8x32xf32>
    %63 = vector.extract_strided_slice %57 {offsets = [0, 64], sizes = [8, 32], strides = [1, 1]} : vector<8x96xf32> to vector<8x32xf32>
    %64 = vector.extract_strided_slice %60 {offsets = [0, 0], sizes = [8, 32], strides = [1, 1]} : vector<8x96xf32> to vector<8x32xf32>
    %65 = vector.extract_strided_slice %60 {offsets = [0, 32], sizes = [8, 32], strides = [1, 1]} : vector<8x96xf32> to vector<8x32xf32>
    %66 = vector.extract_strided_slice %60 {offsets = [0, 64], sizes = [8, 32], strides = [1, 1]} : vector<8x96xf32> to vector<8x32xf32>
    %67 = arith.addf %61, %64 : vector<8x32xf32>
    %68 = arith.addf %62, %65 : vector<8x32xf32>
    %69 = arith.negf %68 : vector<8x32xf32>
    %70 = math.exp %69 : vector<8x32xf32>
    %cst_28 = arith.constant 1.000000e+00 : f32
    %71 = vector.broadcast %cst_28 : f32 to vector<8x32xf32>
    %72 = arith.addf %71, %70 : vector<8x32xf32>
    %73 = arith.divf %71, %72 : vector<8x32xf32>
    %74 = arith.mulf %73, %66 : vector<8x32xf32>
    %75 = arith.addf %63, %74 : vector<8x32xf32>
    %76 = arith.negf %67 : vector<8x32xf32>
    %77 = math.exp %76 : vector<8x32xf32>
    %cst_29 = arith.constant 1.000000e+00 : f32
    %78 = vector.broadcast %cst_29 : f32 to vector<8x32xf32>
    %79 = arith.addf %78, %77 : vector<8x32xf32>
    %80 = arith.divf %78, %79 : vector<8x32xf32>
    %81 = math.tanh %75 : vector<8x32xf32>
    %82 = arith.mulf %80, %51 : vector<8x32xf32>
    %cst_30 = arith.constant 1.000000e+00 : f32
    %83 = vector.broadcast %cst_30 : f32 to vector<8x32xf32>
    %84 = arith.subf %83, %80 : vector<8x32xf32>
    %85 = arith.mulf %84, %81 : vector<8x32xf32>
    %86 = arith.addf %82, %85 : vector<8x32xf32>
    %87 = vector.broadcast %5 : vector<1x32xf32> to vector<8x32xf32>
    %88 = arith.subf %86, %87 : vector<8x32xf32>
    %cst_31 = arith.constant 0.000000e+00 : f32
    %89 = vector.broadcast %cst_31 : f32 to vector<8x32xf32>
    %90 = arith.cmpf ogt, %88, %89 : vector<8x32xf32>
    %cst_32 = arith.constant 1.000000e+00 : f32
    %cst_33 = arith.constant 0.000000e+00 : f32
    %91 = vector.broadcast %cst_32 : f32 to vector<8x32xf32>
    %92 = vector.broadcast %cst_33 : f32 to vector<8x32xf32>
    %93 = arith.select %90, %91, %92 : vector<8x32xi1>, vector<8x32xf32>
    %94 = arith.mulf %93, %86 : vector<8x32xf32>
    %95 = vector.broadcast %5 : vector<1x32xf32> to vector<8x32xf32>
    %96 = arith.mulf %93, %95 : vector<8x32xf32>
    %97 = arith.subf %86, %96 : vector<8x32xf32>
    %98 = tpu.concatenate %94, %97, %93, %8, %67, %68, %75, %9 in 1 : vector<8x32xf32>, vector<8x32xf32>, vector<8x32xf32>, vector<8x32xf32>, vector<8x32xf32>, vector<8x32xf32>, vector<8x32xf32>, vector<8x32xf32> -> vector<8x256xf32>
    %c1_34 = arith.constant 1 : index
    %c0_35 = arith.constant 0 : index
    %c0_36 = arith.constant 0 : index
    %99 = vector.load %arg6[%c1_34, %c0_35, %c0_36] : memref<8x8x256xf32, #tpu.memory_space<vmem>>, vector<1x8x256xf32>
    %100 = vector.shape_cast %99 : vector<1x8x256xf32> to vector<8x256xf32>
    %101 = vector.shape_cast %98 : vector<8x256xf32> to vector<1x8x256xf32>
    tpu.vector_store %arg6[%c1_34, %c0_35, %c0_36], %101 {strides = array<i32>} : memref<8x8x256xf32, #tpu.memory_space<vmem>>, vector<1x8x256xf32>,
    %c2 = arith.constant 2 : index
    %c0_37 = arith.constant 0 : index
    %c0_38 = arith.constant 0 : index
    %102 = vector.load %arg2[%c2, %c0_37, %c0_38] : memref<8x8x96xf32, #tpu.memory_space<vmem>>, vector<1x8x96xf32>
    %103 = vector.shape_cast %102 : vector<1x8x96xf32> to vector<8x96xf32>
    %cst_39 = arith.constant dense<0.000000e+00> : vector<8x96xf32>
    %104 = tpu.matmul %94, %3, %cst_39 {dimension_numbers = #tpu.dot_dimension_numbers<[1], [0], [0], [1], [0, 0, 1, 1], [], []>} : vector<8x32xf32>, vector<32x96xf32>, vector<8x96xf32> -> vector<8x96xf32>
    %105 = vector.broadcast %4 : vector<1x96xf32> to vector<8x96xf32>
    %106 = arith.addf %104, %105 : vector<8x96xf32>
    %107 = vector.extract_strided_slice %103 {offsets = [0, 0], sizes = [8, 32], strides = [1, 1]} : vector<8x96xf32> to vector<8x32xf32>
    %108 = vector.extract_strided_slice %103 {offsets = [0, 32], sizes = [8, 32], strides = [1, 1]} : vector<8x96xf32> to vector<8x32xf32>
    %109 = vector.extract_strided_slice %103 {offsets = [0, 64], sizes = [8, 32], strides = [1, 1]} : vector<8x96xf32> to vector<8x32xf32>
    %110 = vector.extract_strided_slice %106 {offsets = [0, 0], sizes = [8, 32], strides = [1, 1]} : vector<8x96xf32> to vector<8x32xf32>
    %111 = vector.extract_strided_slice %106 {offsets = [0, 32], sizes = [8, 32], strides = [1, 1]} : vector<8x96xf32> to vector<8x32xf32>
    %112 = vector.extract_strided_slice %106 {offsets = [0, 64], sizes = [8, 32], strides = [1, 1]} : vector<8x96xf32> to vector<8x32xf32>
    %113 = arith.addf %107, %110 : vector<8x32xf32>
    %114 = arith.addf %108, %111 : vector<8x32xf32>
    %115 = arith.negf %114 : vector<8x32xf32>
    %116 = math.exp %115 : vector<8x32xf32>
    %cst_40 = arith.constant 1.000000e+00 : f32
    %117 = vector.broadcast %cst_40 : f32 to vector<8x32xf32>
    %118 = arith.addf %117, %116 : vector<8x32xf32>
    %119 = arith.divf %117, %118 : vector<8x32xf32>
    %120 = arith.mulf %119, %112 : vector<8x32xf32>
    %121 = arith.addf %109, %120 : vector<8x32xf32>
    %122 = arith.negf %113 : vector<8x32xf32>
    %123 = math.exp %122 : vector<8x32xf32>
    %cst_41 = arith.constant 1.000000e+00 : f32
    %124 = vector.broadcast %cst_41 : f32 to vector<8x32xf32>
    %125 = arith.addf %124, %123 : vector<8x32xf32>
    %126 = arith.divf %124, %125 : vector<8x32xf32>
    %127 = math.tanh %121 : vector<8x32xf32>
    %128 = arith.mulf %126, %97 : vector<8x32xf32>
    %cst_42 = arith.constant 1.000000e+00 : f32
    %129 = vector.broadcast %cst_42 : f32 to vector<8x32xf32>
    %130 = arith.subf %129, %126 : vector<8x32xf32>
    %131 = arith.mulf %130, %127 : vector<8x32xf32>
    %132 = arith.addf %128, %131 : vector<8x32xf32>
    %133 = vector.broadcast %5 : vector<1x32xf32> to vector<8x32xf32>
    %134 = arith.subf %132, %133 : vector<8x32xf32>
    %cst_43 = arith.constant 0.000000e+00 : f32
    %135 = vector.broadcast %cst_43 : f32 to vector<8x32xf32>
    %136 = arith.cmpf ogt, %134, %135 : vector<8x32xf32>
    %cst_44 = arith.constant 1.000000e+00 : f32
    %cst_45 = arith.constant 0.000000e+00 : f32
    %137 = vector.broadcast %cst_44 : f32 to vector<8x32xf32>
    %138 = vector.broadcast %cst_45 : f32 to vector<8x32xf32>
    %139 = arith.select %136, %137, %138 : vector<8x32xi1>, vector<8x32xf32>
    %140 = arith.mulf %139, %132 : vector<8x32xf32>
    %141 = vector.broadcast %5 : vector<1x32xf32> to vector<8x32xf32>
    %142 = arith.mulf %139, %141 : vector<8x32xf32>
    %143 = arith.subf %132, %142 : vector<8x32xf32>
    %144 = tpu.concatenate %140, %143, %139, %8, %113, %114, %121, %9 in 1 : vector<8x32xf32>, vector<8x32xf32>, vector<8x32xf32>, vector<8x32xf32>, vector<8x32xf32>, vector<8x32xf32>, vector<8x32xf32>, vector<8x32xf32> -> vector<8x256xf32>
    %c2_46 = arith.constant 2 : index
    %c0_47 = arith.constant 0 : index
    %c0_48 = arith.constant 0 : index
    %145 = vector.load %arg6[%c2_46, %c0_47, %c0_48] : memref<8x8x256xf32, #tpu.memory_space<vmem>>, vector<1x8x256xf32>
    %146 = vector.shape_cast %145 : vector<1x8x256xf32> to vector<8x256xf32>
    %147 = vector.shape_cast %144 : vector<8x256xf32> to vector<1x8x256xf32>
    tpu.vector_store %arg6[%c2_46, %c0_47, %c0_48], %147 {strides = array<i32>} : memref<8x8x256xf32, #tpu.memory_space<vmem>>, vector<1x8x256xf32>,
    %c3 = arith.constant 3 : index
    %c0_49 = arith.constant 0 : index
    %c0_50 = arith.constant 0 : index
    %148 = vector.load %arg2[%c3, %c0_49, %c0_50] : memref<8x8x96xf32, #tpu.memory_space<vmem>>, vector<1x8x96xf32>
    %149 = vector.shape_cast %148 : vector<1x8x96xf32> to vector<8x96xf32>
    %cst_51 = arith.constant dense<0.000000e+00> : vector<8x96xf32>
    %150 = tpu.matmul %140, %3, %cst_51 {dimension_numbers = #tpu.dot_dimension_numbers<[1], [0], [0], [1], [0, 0, 1, 1], [], []>} : vector<8x32xf32>, vector<32x96xf32>, vector<8x96xf32> -> vector<8x96xf32>
    %151 = vector.broadcast %4 : vector<1x96xf32> to vector<8x96xf32>
    %152 = arith.addf %150, %151 : vector<8x96xf32>
    %153 = vector.extract_strided_slice %149 {offsets = [0, 0], sizes = [8, 32], strides = [1, 1]} : vector<8x96xf32> to vector<8x32xf32>
    %154 = vector.extract_strided_slice %149 {offsets = [0, 32], sizes = [8, 32], strides = [1, 1]} : vector<8x96xf32> to vector<8x32xf32>
    %155 = vector.extract_strided_slice %149 {offsets = [0, 64], sizes = [8, 32], strides = [1, 1]} : vector<8x96xf32> to vector<8x32xf32>
    %156 = vector.extract_strided_slice %152 {offsets = [0, 0], sizes = [8, 32], strides = [1, 1]} : vector<8x96xf32> to vector<8x32xf32>
    %157 = vector.extract_strided_slice %152 {offsets = [0, 32], sizes = [8, 32], strides = [1, 1]} : vector<8x96xf32> to vector<8x32xf32>
    %158 = vector.extract_strided_slice %152 {offsets = [0, 64], sizes = [8, 32], strides = [1, 1]} : vector<8x96xf32> to vector<8x32xf32>
    %159 = arith.addf %153, %156 : vector<8x32xf32>
    %160 = arith.addf %154, %157 : vector<8x32xf32>
    %161 = arith.negf %160 : vector<8x32xf32>
    %162 = math.exp %161 : vector<8x32xf32>
    %cst_52 = arith.constant 1.000000e+00 : f32
    %163 = vector.broadcast %cst_52 : f32 to vector<8x32xf32>
    %164 = arith.addf %163, %162 : vector<8x32xf32>
    %165 = arith.divf %163, %164 : vector<8x32xf32>
    %166 = arith.mulf %165, %158 : vector<8x32xf32>
    %167 = arith.addf %155, %166 : vector<8x32xf32>
    %168 = arith.negf %159 : vector<8x32xf32>
    %169 = math.exp %168 : vector<8x32xf32>
    %cst_53 = arith.constant 1.000000e+00 : f32
    %170 = vector.broadcast %cst_53 : f32 to vector<8x32xf32>
    %171 = arith.addf %170, %169 : vector<8x32xf32>
    %172 = arith.divf %170, %171 : vector<8x32xf32>
    %173 = math.tanh %167 : vector<8x32xf32>
    %174 = arith.mulf %172, %143 : vector<8x32xf32>
    %cst_54 = arith.constant 1.000000e+00 : f32
    %175 = vector.broadcast %cst_54 : f32 to vector<8x32xf32>
    %176 = arith.subf %175, %172 : vector<8x32xf32>
    %177 = arith.mulf %176, %173 : vector<8x32xf32>
    %178 = arith.addf %174, %177 : vector<8x32xf32>
    %179 = vector.broadcast %5 : vector<1x32xf32> to vector<8x32xf32>
    %180 = arith.subf %178, %179 : vector<8x32xf32>
    %cst_55 = arith.constant 0.000000e+00 : f32
    %181 = vector.broadcast %cst_55 : f32 to vector<8x32xf32>
    %182 = arith.cmpf ogt, %180, %181 : vector<8x32xf32>
    %cst_56 = arith.constant 1.000000e+00 : f32
    %cst_57 = arith.constant 0.000000e+00 : f32
    %183 = vector.broadcast %cst_56 : f32 to vector<8x32xf32>
    %184 = vector.broadcast %cst_57 : f32 to vector<8x32xf32>
    %185 = arith.select %182, %183, %184 : vector<8x32xi1>, vector<8x32xf32>
    %186 = arith.mulf %185, %178 : vector<8x32xf32>
    %187 = vector.broadcast %5 : vector<1x32xf32> to vector<8x32xf32>
    %188 = arith.mulf %185, %187 : vector<8x32xf32>
    %189 = arith.subf %178, %188 : vector<8x32xf32>
    %190 = tpu.concatenate %186, %189, %185, %8, %159, %160, %167, %9 in 1 : vector<8x32xf32>, vector<8x32xf32>, vector<8x32xf32>, vector<8x32xf32>, vector<8x32xf32>, vector<8x32xf32>, vector<8x32xf32>, vector<8x32xf32> -> vector<8x256xf32>
    %c3_58 = arith.constant 3 : index
    %c0_59 = arith.constant 0 : index
    %c0_60 = arith.constant 0 : index
    %191 = vector.load %arg6[%c3_58, %c0_59, %c0_60] : memref<8x8x256xf32, #tpu.memory_space<vmem>>, vector<1x8x256xf32>
    %192 = vector.shape_cast %191 : vector<1x8x256xf32> to vector<8x256xf32>
    %193 = vector.shape_cast %190 : vector<8x256xf32> to vector<1x8x256xf32>
    tpu.vector_store %arg6[%c3_58, %c0_59, %c0_60], %193 {strides = array<i32>} : memref<8x8x256xf32, #tpu.memory_space<vmem>>, vector<1x8x256xf32>,
    %c4 = arith.constant 4 : index
    %c0_61 = arith.constant 0 : index
    %c0_62 = arith.constant 0 : index
    %194 = vector.load %arg2[%c4, %c0_61, %c0_62] : memref<8x8x96xf32, #tpu.memory_space<vmem>>, vector<1x8x96xf32>
    %195 = vector.shape_cast %194 : vector<1x8x96xf32> to vector<8x96xf32>
    %cst_63 = arith.constant dense<0.000000e+00> : vector<8x96xf32>
    %196 = tpu.matmul %186, %3, %cst_63 {dimension_numbers = #tpu.dot_dimension_numbers<[1], [0], [0], [1], [0, 0, 1, 1], [], []>} : vector<8x32xf32>, vector<32x96xf32>, vector<8x96xf32> -> vector<8x96xf32>
    %197 = vector.broadcast %4 : vector<1x96xf32> to vector<8x96xf32>
    %198 = arith.addf %196, %197 : vector<8x96xf32>
    %199 = vector.extract_strided_slice %195 {offsets = [0, 0], sizes = [8, 32], strides = [1, 1]} : vector<8x96xf32> to vector<8x32xf32>
    %200 = vector.extract_strided_slice %195 {offsets = [0, 32], sizes = [8, 32], strides = [1, 1]} : vector<8x96xf32> to vector<8x32xf32>
    %201 = vector.extract_strided_slice %195 {offsets = [0, 64], sizes = [8, 32], strides = [1, 1]} : vector<8x96xf32> to vector<8x32xf32>
    %202 = vector.extract_strided_slice %198 {offsets = [0, 0], sizes = [8, 32], strides = [1, 1]} : vector<8x96xf32> to vector<8x32xf32>
    %203 = vector.extract_strided_slice %198 {offsets = [0, 32], sizes = [8, 32], strides = [1, 1]} : vector<8x96xf32> to vector<8x32xf32>
    %204 = vector.extract_strided_slice %198 {offsets = [0, 64], sizes = [8, 32], strides = [1, 1]} : vector<8x96xf32> to vector<8x32xf32>
    %205 = arith.addf %199, %202 : vector<8x32xf32>
    %206 = arith.addf %200, %203 : vector<8x32xf32>
    %207 = arith.negf %206 : vector<8x32xf32>
    %208 = math.exp %207 : vector<8x32xf32>
    %cst_64 = arith.constant 1.000000e+00 : f32
    %209 = vector.broadcast %cst_64 : f32 to vector<8x32xf32>
    %210 = arith.addf %209, %208 : vector<8x32xf32>
    %211 = arith.divf %209, %210 : vector<8x32xf32>
    %212 = arith.mulf %211, %204 : vector<8x32xf32>
    %213 = arith.addf %201, %212 : vector<8x32xf32>
    %214 = arith.negf %205 : vector<8x32xf32>
    %215 = math.exp %214 : vector<8x32xf32>
    %cst_65 = arith.constant 1.000000e+00 : f32
    %216 = vector.broadcast %cst_65 : f32 to vector<8x32xf32>
    %217 = arith.addf %216, %215 : vector<8x32xf32>
    %218 = arith.divf %216, %217 : vector<8x32xf32>
    %219 = math.tanh %213 : vector<8x32xf32>
    %220 = arith.mulf %218, %189 : vector<8x32xf32>
    %cst_66 = arith.constant 1.000000e+00 : f32
    %221 = vector.broadcast %cst_66 : f32 to vector<8x32xf32>
    %222 = arith.subf %221, %218 : vector<8x32xf32>
    %223 = arith.mulf %222, %219 : vector<8x32xf32>
    %224 = arith.addf %220, %223 : vector<8x32xf32>
    %225 = vector.broadcast %5 : vector<1x32xf32> to vector<8x32xf32>
    %226 = arith.subf %224, %225 : vector<8x32xf32>
    %cst_67 = arith.constant 0.000000e+00 : f32
    %227 = vector.broadcast %cst_67 : f32 to vector<8x32xf32>
    %228 = arith.cmpf ogt, %226, %227 : vector<8x32xf32>
    %cst_68 = arith.constant 1.000000e+00 : f32
    %cst_69 = arith.constant 0.000000e+00 : f32
    %229 = vector.broadcast %cst_68 : f32 to vector<8x32xf32>
    %230 = vector.broadcast %cst_69 : f32 to vector<8x32xf32>
    %231 = arith.select %228, %229, %230 : vector<8x32xi1>, vector<8x32xf32>
    %232 = arith.mulf %231, %224 : vector<8x32xf32>
    %233 = vector.broadcast %5 : vector<1x32xf32> to vector<8x32xf32>
    %234 = arith.mulf %231, %233 : vector<8x32xf32>
    %235 = arith.subf %224, %234 : vector<8x32xf32>
    %236 = tpu.concatenate %232, %235, %231, %8, %205, %206, %213, %9 in 1 : vector<8x32xf32>, vector<8x32xf32>, vector<8x32xf32>, vector<8x32xf32>, vector<8x32xf32>, vector<8x32xf32>, vector<8x32xf32>, vector<8x32xf32> -> vector<8x256xf32>
    %c4_70 = arith.constant 4 : index
    %c0_71 = arith.constant 0 : index
    %c0_72 = arith.constant 0 : index
    %237 = vector.load %arg6[%c4_70, %c0_71, %c0_72] : memref<8x8x256xf32, #tpu.memory_space<vmem>>, vector<1x8x256xf32>
    %238 = vector.shape_cast %237 : vector<1x8x256xf32> to vector<8x256xf32>
    %239 = vector.shape_cast %236 : vector<8x256xf32> to vector<1x8x256xf32>
    tpu.vector_store %arg6[%c4_70, %c0_71, %c0_72], %239 {strides = array<i32>} : memref<8x8x256xf32, #tpu.memory_space<vmem>>, vector<1x8x256xf32>,
    %c5 = arith.constant 5 : index
    %c0_73 = arith.constant 0 : index
    %c0_74 = arith.constant 0 : index
    %240 = vector.load %arg2[%c5, %c0_73, %c0_74] : memref<8x8x96xf32, #tpu.memory_space<vmem>>, vector<1x8x96xf32>
    %241 = vector.shape_cast %240 : vector<1x8x96xf32> to vector<8x96xf32>
    %cst_75 = arith.constant dense<0.000000e+00> : vector<8x96xf32>
    %242 = tpu.matmul %232, %3, %cst_75 {dimension_numbers = #tpu.dot_dimension_numbers<[1], [0], [0], [1], [0, 0, 1, 1], [], []>} : vector<8x32xf32>, vector<32x96xf32>, vector<8x96xf32> -> vector<8x96xf32>
    %243 = vector.broadcast %4 : vector<1x96xf32> to vector<8x96xf32>
    %244 = arith.addf %242, %243 : vector<8x96xf32>
    %245 = vector.extract_strided_slice %241 {offsets = [0, 0], sizes = [8, 32], strides = [1, 1]} : vector<8x96xf32> to vector<8x32xf32>
    %246 = vector.extract_strided_slice %241 {offsets = [0, 32], sizes = [8, 32], strides = [1, 1]} : vector<8x96xf32> to vector<8x32xf32>
    %247 = vector.extract_strided_slice %241 {offsets = [0, 64], sizes = [8, 32], strides = [1, 1]} : vector<8x96xf32> to vector<8x32xf32>
    %248 = vector.extract_strided_slice %244 {offsets = [0, 0], sizes = [8, 32], strides = [1, 1]} : vector<8x96xf32> to vector<8x32xf32>
    %249 = vector.extract_strided_slice %244 {offsets = [0, 32], sizes = [8, 32], strides = [1, 1]} : vector<8x96xf32> to vector<8x32xf32>
    %250 = vector.extract_strided_slice %244 {offsets = [0, 64], sizes = [8, 32], strides = [1, 1]} : vector<8x96xf32> to vector<8x32xf32>
    %251 = arith.addf %245, %248 : vector<8x32xf32>
    %252 = arith.addf %246, %249 : vector<8x32xf32>
    %253 = arith.negf %252 : vector<8x32xf32>
    %254 = math.exp %253 : vector<8x32xf32>
    %cst_76 = arith.constant 1.000000e+00 : f32
    %255 = vector.broadcast %cst_76 : f32 to vector<8x32xf32>
    %256 = arith.addf %255, %254 : vector<8x32xf32>
    %257 = arith.divf %255, %256 : vector<8x32xf32>
    %258 = arith.mulf %257, %250 : vector<8x32xf32>
    %259 = arith.addf %247, %258 : vector<8x32xf32>
    %260 = arith.negf %251 : vector<8x32xf32>
    %261 = math.exp %260 : vector<8x32xf32>
    %cst_77 = arith.constant 1.000000e+00 : f32
    %262 = vector.broadcast %cst_77 : f32 to vector<8x32xf32>
    %263 = arith.addf %262, %261 : vector<8x32xf32>
    %264 = arith.divf %262, %263 : vector<8x32xf32>
    %265 = math.tanh %259 : vector<8x32xf32>
    %266 = arith.mulf %264, %235 : vector<8x32xf32>
    %cst_78 = arith.constant 1.000000e+00 : f32
    %267 = vector.broadcast %cst_78 : f32 to vector<8x32xf32>
    %268 = arith.subf %267, %264 : vector<8x32xf32>
    %269 = arith.mulf %268, %265 : vector<8x32xf32>
    %270 = arith.addf %266, %269 : vector<8x32xf32>
    %271 = vector.broadcast %5 : vector<1x32xf32> to vector<8x32xf32>
    %272 = arith.subf %270, %271 : vector<8x32xf32>
    %cst_79 = arith.constant 0.000000e+00 : f32
    %273 = vector.broadcast %cst_79 : f32 to vector<8x32xf32>
    %274 = arith.cmpf ogt, %272, %273 : vector<8x32xf32>
    %cst_80 = arith.constant 1.000000e+00 : f32
    %cst_81 = arith.constant 0.000000e+00 : f32
    %275 = vector.broadcast %cst_80 : f32 to vector<8x32xf32>
    %276 = vector.broadcast %cst_81 : f32 to vector<8x32xf32>
    %277 = arith.select %274, %275, %276 : vector<8x32xi1>, vector<8x32xf32>
    %278 = arith.mulf %277, %270 : vector<8x32xf32>
    %279 = vector.broadcast %5 : vector<1x32xf32> to vector<8x32xf32>
    %280 = arith.mulf %277, %279 : vector<8x32xf32>
    %281 = arith.subf %270, %280 : vector<8x32xf32>
    %282 = tpu.concatenate %278, %281, %277, %8, %251, %252, %259, %9 in 1 : vector<8x32xf32>, vector<8x32xf32>, vector<8x32xf32>, vector<8x32xf32>, vector<8x32xf32>, vector<8x32xf32>, vector<8x32xf32>, vector<8x32xf32> -> vector<8x256xf32>
    %c5_82 = arith.constant 5 : index
    %c0_83 = arith.constant 0 : index
    %c0_84 = arith.constant 0 : index
    %283 = vector.load %arg6[%c5_82, %c0_83, %c0_84] : memref<8x8x256xf32, #tpu.memory_space<vmem>>, vector<1x8x256xf32>
    %284 = vector.shape_cast %283 : vector<1x8x256xf32> to vector<8x256xf32>
    %285 = vector.shape_cast %282 : vector<8x256xf32> to vector<1x8x256xf32>
    tpu.vector_store %arg6[%c5_82, %c0_83, %c0_84], %285 {strides = array<i32>} : memref<8x8x256xf32, #tpu.memory_space<vmem>>, vector<1x8x256xf32>,
    %c6 = arith.constant 6 : index
    %c0_85 = arith.constant 0 : index
    %c0_86 = arith.constant 0 : index
    %286 = vector.load %arg2[%c6, %c0_85, %c0_86] : memref<8x8x96xf32, #tpu.memory_space<vmem>>, vector<1x8x96xf32>
    %287 = vector.shape_cast %286 : vector<1x8x96xf32> to vector<8x96xf32>
    %cst_87 = arith.constant dense<0.000000e+00> : vector<8x96xf32>
    %288 = tpu.matmul %278, %3, %cst_87 {dimension_numbers = #tpu.dot_dimension_numbers<[1], [0], [0], [1], [0, 0, 1, 1], [], []>} : vector<8x32xf32>, vector<32x96xf32>, vector<8x96xf32> -> vector<8x96xf32>
    %289 = vector.broadcast %4 : vector<1x96xf32> to vector<8x96xf32>
    %290 = arith.addf %288, %289 : vector<8x96xf32>
    %291 = vector.extract_strided_slice %287 {offsets = [0, 0], sizes = [8, 32], strides = [1, 1]} : vector<8x96xf32> to vector<8x32xf32>
    %292 = vector.extract_strided_slice %287 {offsets = [0, 32], sizes = [8, 32], strides = [1, 1]} : vector<8x96xf32> to vector<8x32xf32>
    %293 = vector.extract_strided_slice %287 {offsets = [0, 64], sizes = [8, 32], strides = [1, 1]} : vector<8x96xf32> to vector<8x32xf32>
    %294 = vector.extract_strided_slice %290 {offsets = [0, 0], sizes = [8, 32], strides = [1, 1]} : vector<8x96xf32> to vector<8x32xf32>
    %295 = vector.extract_strided_slice %290 {offsets = [0, 32], sizes = [8, 32], strides = [1, 1]} : vector<8x96xf32> to vector<8x32xf32>
    %296 = vector.extract_strided_slice %290 {offsets = [0, 64], sizes = [8, 32], strides = [1, 1]} : vector<8x96xf32> to vector<8x32xf32>
    %297 = arith.addf %291, %294 : vector<8x32xf32>
    %298 = arith.addf %292, %295 : vector<8x32xf32>
    %299 = arith.negf %298 : vector<8x32xf32>
    %300 = math.exp %299 : vector<8x32xf32>
    %cst_88 = arith.constant 1.000000e+00 : f32
    %301 = vector.broadcast %cst_88 : f32 to vector<8x32xf32>
    %302 = arith.addf %301, %300 : vector<8x32xf32>
    %303 = arith.divf %301, %302 : vector<8x32xf32>
    %304 = arith.mulf %303, %296 : vector<8x32xf32>
    %305 = arith.addf %293, %304 : vector<8x32xf32>
    %306 = arith.negf %297 : vector<8x32xf32>
    %307 = math.exp %306 : vector<8x32xf32>
    %cst_89 = arith.constant 1.000000e+00 : f32
    %308 = vector.broadcast %cst_89 : f32 to vector<8x32xf32>
    %309 = arith.addf %308, %307 : vector<8x32xf32>
    %310 = arith.divf %308, %309 : vector<8x32xf32>
    %311 = math.tanh %305 : vector<8x32xf32>
    %312 = arith.mulf %310, %281 : vector<8x32xf32>
    %cst_90 = arith.constant 1.000000e+00 : f32
    %313 = vector.broadcast %cst_90 : f32 to vector<8x32xf32>
    %314 = arith.subf %313, %310 : vector<8x32xf32>
    %315 = arith.mulf %314, %311 : vector<8x32xf32>
    %316 = arith.addf %312, %315 : vector<8x32xf32>
    %317 = vector.broadcast %5 : vector<1x32xf32> to vector<8x32xf32>
    %318 = arith.subf %316, %317 : vector<8x32xf32>
    %cst_91 = arith.constant 0.000000e+00 : f32
    %319 = vector.broadcast %cst_91 : f32 to vector<8x32xf32>
    %320 = arith.cmpf ogt, %318, %319 : vector<8x32xf32>
    %cst_92 = arith.constant 1.000000e+00 : f32
    %cst_93 = arith.constant 0.000000e+00 : f32
    %321 = vector.broadcast %cst_92 : f32 to vector<8x32xf32>
    %322 = vector.broadcast %cst_93 : f32 to vector<8x32xf32>
    %323 = arith.select %320, %321, %322 : vector<8x32xi1>, vector<8x32xf32>
    %324 = arith.mulf %323, %316 : vector<8x32xf32>
    %325 = vector.broadcast %5 : vector<1x32xf32> to vector<8x32xf32>
    %326 = arith.mulf %323, %325 : vector<8x32xf32>
    %327 = arith.subf %316, %326 : vector<8x32xf32>
    %328 = tpu.concatenate %324, %327, %323, %8, %297, %298, %305, %9 in 1 : vector<8x32xf32>, vector<8x32xf32>, vector<8x32xf32>, vector<8x32xf32>, vector<8x32xf32>, vector<8x32xf32>, vector<8x32xf32>, vector<8x32xf32> -> vector<8x256xf32>
    %c6_94 = arith.constant 6 : index
    %c0_95 = arith.constant 0 : index
    %c0_96 = arith.constant 0 : index
    %329 = vector.load %arg6[%c6_94, %c0_95, %c0_96] : memref<8x8x256xf32, #tpu.memory_space<vmem>>, vector<1x8x256xf32>
    %330 = vector.shape_cast %329 : vector<1x8x256xf32> to vector<8x256xf32>
    %331 = vector.shape_cast %328 : vector<8x256xf32> to vector<1x8x256xf32>
    tpu.vector_store %arg6[%c6_94, %c0_95, %c0_96], %331 {strides = array<i32>} : memref<8x8x256xf32, #tpu.memory_space<vmem>>, vector<1x8x256xf32>,
    %c7 = arith.constant 7 : index
    %c0_97 = arith.constant 0 : index
    %c0_98 = arith.constant 0 : index
    %332 = vector.load %arg2[%c7, %c0_97, %c0_98] : memref<8x8x96xf32, #tpu.memory_space<vmem>>, vector<1x8x96xf32>
    %333 = vector.shape_cast %332 : vector<1x8x96xf32> to vector<8x96xf32>
    %cst_99 = arith.constant dense<0.000000e+00> : vector<8x96xf32>
    %334 = tpu.matmul %324, %3, %cst_99 {dimension_numbers = #tpu.dot_dimension_numbers<[1], [0], [0], [1], [0, 0, 1, 1], [], []>} : vector<8x32xf32>, vector<32x96xf32>, vector<8x96xf32> -> vector<8x96xf32>
    %335 = vector.broadcast %4 : vector<1x96xf32> to vector<8x96xf32>
    %336 = arith.addf %334, %335 : vector<8x96xf32>
    %337 = vector.extract_strided_slice %333 {offsets = [0, 0], sizes = [8, 32], strides = [1, 1]} : vector<8x96xf32> to vector<8x32xf32>
    %338 = vector.extract_strided_slice %333 {offsets = [0, 32], sizes = [8, 32], strides = [1, 1]} : vector<8x96xf32> to vector<8x32xf32>
    %339 = vector.extract_strided_slice %333 {offsets = [0, 64], sizes = [8, 32], strides = [1, 1]} : vector<8x96xf32> to vector<8x32xf32>
    %340 = vector.extract_strided_slice %336 {offsets = [0, 0], sizes = [8, 32], strides = [1, 1]} : vector<8x96xf32> to vector<8x32xf32>
    %341 = vector.extract_strided_slice %336 {offsets = [0, 32], sizes = [8, 32], strides = [1, 1]} : vector<8x96xf32> to vector<8x32xf32>
    %342 = vector.extract_strided_slice %336 {offsets = [0, 64], sizes = [8, 32], strides = [1, 1]} : vector<8x96xf32> to vector<8x32xf32>
    %343 = arith.addf %337, %340 : vector<8x32xf32>
    %344 = arith.addf %338, %341 : vector<8x32xf32>
    %345 = arith.negf %344 : vector<8x32xf32>
    %346 = math.exp %345 : vector<8x32xf32>
    %cst_100 = arith.constant 1.000000e+00 : f32
    %347 = vector.broadcast %cst_100 : f32 to vector<8x32xf32>
    %348 = arith.addf %347, %346 : vector<8x32xf32>
    %349 = arith.divf %347, %348 : vector<8x32xf32>
    %350 = arith.mulf %349, %342 : vector<8x32xf32>
    %351 = arith.addf %339, %350 : vector<8x32xf32>
    %352 = arith.negf %343 : vector<8x32xf32>
    %353 = math.exp %352 : vector<8x32xf32>
    %cst_101 = arith.constant 1.000000e+00 : f32
    %354 = vector.broadcast %cst_101 : f32 to vector<8x32xf32>
    %355 = arith.addf %354, %353 : vector<8x32xf32>
    %356 = arith.divf %354, %355 : vector<8x32xf32>
    %357 = math.tanh %351 : vector<8x32xf32>
    %358 = arith.mulf %356, %327 : vector<8x32xf32>
    %cst_102 = arith.constant 1.000000e+00 : f32
    %359 = vector.broadcast %cst_102 : f32 to vector<8x32xf32>
    %360 = arith.subf %359, %356 : vector<8x32xf32>
    %361 = arith.mulf %360, %357 : vector<8x32xf32>
    %362 = arith.addf %358, %361 : vector<8x32xf32>
    %363 = vector.broadcast %5 : vector<1x32xf32> to vector<8x32xf32>
    %364 = arith.subf %362, %363 : vector<8x32xf32>
    %cst_103 = arith.constant 0.000000e+00 : f32
    %365 = vector.broadcast %cst_103 : f32 to vector<8x32xf32>
    %366 = arith.cmpf ogt, %364, %365 : vector<8x32xf32>
    %cst_104 = arith.constant 1.000000e+00 : f32
    %cst_105 = arith.constant 0.000000e+00 : f32
    %367 = vector.broadcast %cst_104 : f32 to vector<8x32xf32>
    %368 = vector.broadcast %cst_105 : f32 to vector<8x32xf32>
    %369 = arith.select %366, %367, %368 : vector<8x32xi1>, vector<8x32xf32>
    %370 = arith.mulf %369, %362 : vector<8x32xf32>
    %371 = vector.broadcast %5 : vector<1x32xf32> to vector<8x32xf32>
    %372 = arith.mulf %369, %371 : vector<8x32xf32>
    %373 = arith.subf %362, %372 : vector<8x32xf32>
    %c0_i32_106 = arith.constant 0 : i32
    %374 = arith.cmpi eq, %arg1, %c0_i32_106 : i32
    %375 = arith.select %374, %362, %373 : vector<8x32xf32>
    %376 = tpu.concatenate %370, %375, %369, %8, %343, %344, %351, %9 in 1 : vector<8x32xf32>, vector<8x32xf32>, vector<8x32xf32>, vector<8x32xf32>, vector<8x32xf32>, vector<8x32xf32>, vector<8x32xf32>, vector<8x32xf32> -> vector<8x256xf32>
    %c7_107 = arith.constant 7 : index
    %c0_108 = arith.constant 0 : index
    %c0_109 = arith.constant 0 : index
    %377 = vector.load %arg6[%c7_107, %c0_108, %c0_109] : memref<8x8x256xf32, #tpu.memory_space<vmem>>, vector<1x8x256xf32>
    %378 = vector.shape_cast %377 : vector<1x8x256xf32> to vector<8x256xf32>
    %379 = vector.shape_cast %376 : vector<8x256xf32> to vector<1x8x256xf32>
    tpu.vector_store %arg6[%c7_107, %c0_108, %c0_109], %379 {strides = array<i32>} : memref<8x8x256xf32, #tpu.memory_space<vmem>>, vector<1x8x256xf32>,
    %c0_110 = arith.constant 0 : index
    %c0_111 = arith.constant 0 : index
    %380 = vector.load %arg7[%c0_110, %c0_111] : memref<8x32xf32, #tpu.memory_space<vmem>>, vector<8x32xf32>
    tpu.vector_store %arg7[%c0_110, %c0_111], %370 {strides = array<i32>} : memref<8x32xf32, #tpu.memory_space<vmem>>, vector<8x32xf32>,
    %c0_112 = arith.constant 0 : index
    %c0_113 = arith.constant 0 : index
    %381 = vector.load %arg8[%c0_112, %c0_113] : memref<8x32xf32, #tpu.memory_space<vmem>>, vector<8x32xf32>
    tpu.vector_store %arg8[%c0_112, %c0_113], %373 {strides = array<i32>} : memref<8x32xf32, #tpu.memory_space<vmem>>, vector<8x32xf32>,
    %c0_114 = arith.constant 0 : index
    %c0_115 = arith.constant 0 : index
    %382 = vector.load %arg9[%c0_114, %c0_115] : memref<8x32xf32, #tpu.memory_space<vmem>>, vector<8x32xf32>
    tpu.vector_store %arg9[%c0_114, %c0_115], %8 {strides = array<i32>} : memref<8x32xf32, #tpu.memory_space<vmem>>, vector<8x32xf32>,
    return
  }
  func.func @transform_0(%arg0: i32, %arg1: i32) -> (i32, i32, i32) {
    %c0_i32 = arith.constant 0 : i32
    %c0_i32_0 = arith.constant 0 : i32
    return %arg1, %arg0, %c0_i32 : i32, i32, i32
  }
  func.func @transform_1(%arg0: i32, %arg1: i32) -> (i32, i32) {
    %c0_i32 = arith.constant 0 : i32
    %c0_i32_0 = arith.constant 0 : i32
    %c0_i32_1 = arith.constant 0 : i32
    return %c0_i32, %c0_i32_0 : i32, i32
  }
  func.func @transform_2(%arg0: i32, %arg1: i32) -> (i32, i32) {
    %c0_i32 = arith.constant 0 : i32
    %c0_i32_0 = arith.constant 0 : i32
    %c0_i32_1 = arith.constant 0 : i32
    return %c0_i32, %c0_i32_0 : i32, i32
  }
  func.func @transform_3(%arg0: i32, %arg1: i32) -> (i32, i32) {
    %c0_i32 = arith.constant 0 : i32
    %c0_i32_0 = arith.constant 0 : i32
    %c0_i32_1 = arith.constant 0 : i32
    return %c0_i32, %c0_i32_0 : i32, i32
  }
  func.func @transform_4(%arg0: i32, %arg1: i32) -> (i32, i32, i32) {
    %c0_i32 = arith.constant 0 : i32
    %c0_i32_0 = arith.constant 0 : i32
    return %arg1, %arg0, %c0_i32 : i32, i32, i32
  }
}

</mosaic_0001>

<llo_original>
// kernel: tpu_custom_call.1
$region0: #{tpu_custom_call.1}
  #allocation0 [shape = 'u32[]', space=smem, size = 0x4, offset = 0x4, fixed_abs, tag = 'smem constant byte address 0x4 - core index']
  #allocation1 [shape = 'u32[144,128]{1,0:T(1,128)}', space=vmem, size = 0x12000, scoped, tag = 'internal scratch']
  #allocation2 [shape = 'f32[8,32]{1,0:T(8,128)}', space=vmem, size = 0x1000, scoped, tag = 'scratch operand']
  #allocation3 [shape = 'f32[8,32]{1,0:T(8,128)}', space=vmem, size = 0x1000, scoped, tag = 'scratch operand']
  #allocation4 [shape = 'f32[8,32]{1,0:T(8,128)}', space=vmem, size = 0x1000, scoped, tag = 'scratch operand']
  %s0 = inlined_call_operand.hbm [shape: f32[8,8,96], index: 0, kind: input, shape index: {}]
  %s1 = inlined_call_operand.hbm [shape: f32[32,96], index: 1, kind: input, shape index: {}]
  %s2 = inlined_call_operand.vmem [shape: f32[1,96], index: 2, kind: input, shape index: {}]
  %s3 = inlined_call_operand.vmem [shape: f32[1,32], index: 3, kind: input, shape index: {}]
  %s4 = inlined_call_operand.hbm [shape: f32[8,8,256], index: 4, kind: output, shape index: {}]
  %s5 = sld [smem:[#allocation0]]
  $region38: #{tpu_custom_call.1} parent=0
    _
  %s7 = ssub.s32 1, %s5
  %s8 = scalar_select 0, %s7, %s5
  $region1: #{tpu_custom_call.1} parent=0
    #allocation5 [shape = 'u8[32768]{0}', space=vmem, size = 0x8000, scoped, tag = 'input window, operand 0, single buffered']
    #allocation6 [shape = 's32[1]{0}', space=sflag, size = 0x4, scoped, tag = 'scoped memory for tpu_custom_call.1']
    #allocation7 [shape = 's32[1]{0}', space=sflag, size = 0x4, scoped, tag = 'scoped memory for tpu_custom_call.1']
    #allocation8 [shape = 'u8[16384]{0}', space=vmem, size = 0x4000, scoped, tag = 'input window, operand 1, single buffered']
    #allocation9 [shape = 's32[1]{0}', space=sflag, size = 0x4, scoped, tag = 'scoped memory for tpu_custom_call.1']
    #allocation10 [shape = 'u8[65536]{0}', space=vmem, size = 0x10000, scoped, tag = 'output window, operand 0, single buffered']
    %9 = vsyncpa [#allocation6], 0
    %10 = vsyncpa [#allocation9], 0
    %11 = vsyncpa [#allocation7], 0
    // Predicated region
    $region2: #{tpu_custom_call.1} parent=1 // pred_check
      _
    $region3: #{tpu_custom_call.1} parent=1 // pred_check_branch
      %13 = sbr.rel (0) target = $region5
    $region4: #{tpu_custom_call.1} parent=1 // pred_region
      %s15 = ssub.s32 1024, 1024
      %16 = vsyncadd [#allocation6], %s15
      %s17 = sshll.u32 [#allocation5], 4
      %s18 = int_to_ptr.vmem [resolvable:$true] %s17
      %23 = dma.hbm_to_vmem [thread:$0]  %s0, 1024, %s18, [#allocation6], 128, 128, 8
    $region5: #{tpu_custom_call.1} parent=1 // pred_fallthru
      _
    // Predicated region
    $region6: #{tpu_custom_call.1} parent=1 // pred_check
      _
    $region7: #{tpu_custom_call.1} parent=1 // pred_check_branch
      %25 = sbr.rel (0) target = $region9
    $region8: #{tpu_custom_call.1} parent=1 // pred_region
      %s27 = ssub.s32 512, 512
      %28 = vsyncadd [#allocation9], %s27
      %s29 = sshll.u32 [#allocation8], 4
      %s30 = int_to_ptr.vmem [resolvable:$true] %s29
      %35 = dma.hbm_to_vmem [thread:$0]  %s1, 512, %s30, [#allocation9], 128, 128, 8
    $region9: #{tpu_custom_call.1} parent=1 // pred_fallthru
      _
    // Predicated region
    $region10: #{tpu_custom_call.1} parent=1 // pred_check
      _
    $region11: #{tpu_custom_call.1} parent=1 // pred_check_branch
      %37 = sbr.rel (0) target = $region13
    $region12: #{tpu_custom_call.1} parent=1 // pred_region
      _
    $region13: #{tpu_custom_call.1} parent=1 // pred_fallthru
      _
    // Predicated region
    $region14: #{tpu_custom_call.1} parent=1 // pred_check
      _
    $region15: #{tpu_custom_call.1} parent=1 // pred_check_branch
      %39 = sbr.rel (0) target = $region17
    $region16: #{tpu_custom_call.1} parent=1 // pred_region
      _
    $region17: #{tpu_custom_call.1} parent=1 // pred_fallthru
      _
    // Predicated region
    $region18: #{tpu_custom_call.1} parent=1 // pred_check
      _
    $region19: #{tpu_custom_call.1} parent=1 // pred_check_branch
      %41 = sbr.rel (0) target = $region21
    $region20: #{tpu_custom_call.1} parent=1 // pred_region
      %42 = dma.done [#allocation6], 1024
    $region21: #{tpu_custom_call.1} parent=1 // pred_fallthru
      _
    // Predicated region
    $region22: #{tpu_custom_call.1} parent=1 // pred_check
      _
    $region23: #{tpu_custom_call.1} parent=1 // pred_check_branch
      %44 = sbr.rel (0) target = $region25
    $region24: #{tpu_custom_call.1} parent=1 // pred_region
      %45 = dma.done [#allocation9], 512
    $region25: #{tpu_custom_call.1} parent=1 // pred_fallthru
      _
    %p46 = scmp.eq.s32.totalorder 0, 0
    // Predicated region
    $region26: #{tpu_custom_call.1} parent=1 // pred_check
      %p47 = pneg %p46
    $region27: #{tpu_custom_call.1} parent=1 // pred_check_branch
      %49 = sbr.rel (%p47) target = $region29
    $region28: #{tpu_custom_call.1} parent=1 // pred_region
      %vm50 = vcmask 261120
      %51 = vst.msk [vmem:[#allocation2] sm:$0xff] %vm50, 0.0
      %52 = vst.msk [vmem:[#allocation3] sm:$0xff] %vm50, 0.0
      %53 = vst.msk [vmem:[#allocation4] sm:$0xff] %vm50, 0.0
    $region29: #{tpu_custom_call.1} parent=1 // pred_fallthru
      _
    %v54 = vld [vmem:[#allocation8] sm:$0xff]
    %v55 = vld [vmem:[#allocation8 + $0x8] sm:$0xff]
    %v56 = vld [vmem:[#allocation8 + $0x10] sm:$0xff]
    %v57 = vld [vmem:[#allocation8 + $0x18] sm:$0xff]
    %v58 = vld [vmem:[%s2] sm:$0x1]
    %v59 = vld [vmem:[%s3] sm:$0x1]
    %v60 = vld [vmem:[#allocation2] sm:$0xff]
    %v61 = vld [vmem:[#allocation3] sm:$0xff]
    %v62 = vld [vmem:[#allocation4] sm:$0xff]
    %v63 = vld [vmem:[#allocation5] sm:$0xff]
    %v65 = vlaneseq
    %v66 = vshrl.u32 %v65, 7
    %v67 = vsub.s32 0, %v66
    %v68 = vrot.slane %v58, %v67
    %vm70 = vcmask 261120
    %v72 = vsel %vm70, %v60, 0
    %74 = vmatprep.subr.mxu0 0.0
    %75 = vmatpush1.msra.mxu0 %v54
    %76 = vmatprep.subr.mxu0 0.0
    %77 = vmatpush1.msra.mxu0 %v55
    %78 = vmatprep.subr.mxu0 0.0
    %79 = vmatpush1.msra.mxu0 %v56
    %80 = vmatprep.subr.mxu0 0.0
    %81 = vmatpush1.msra.mxu0 %v57
    %82 = vmatprep.subr.mxu0 0.0
    %83 = vmatpush1.msra.mxu0 0.0
    %84 = vmatprep.subr.mxu0 0.0
    %85 = vmatpush1.msra.mxu0 0.0
    %86 = vmatprep.subr.mxu0 0.0
    %87 = vmatpush1.msra.mxu0 0.0
    %88 = vmatprep.subr.mxu0 0.0
    %89 = vmatpush1.msra.mxu0 0.0
    %90 = vmatprep.subr.mxu0 0.0
    %91 = vmatpush1.msra.mxu0 0.0
    %92 = vmatprep.subr.mxu0 0.0
    %93 = vmatpush1.msra.mxu0 0.0
    %94 = vmatprep.subr.mxu0 0.0
    %95 = vmatpush1.msra.mxu0 0.0
    %96 = vmatprep.subr.mxu0 0.0
    %97 = vmatpush1.msra.mxu0 0.0
    %98 = vmatprep.subr.mxu0 0.0
    %99 = vmatpush1.msra.mxu0 0.0
    %100 = vmatprep.subr.mxu0 0.0
    %101 = vmatpush1.msra.mxu0 0.0
    %102 = vmatprep.subr.mxu0 0.0
    %103 = vmatpush1.msra.mxu0 0.0
    %104 = vmatprep.subr.mxu0 0.0
    %105 = vmatpush1.msra.mxu0 0.0
    %106 = vmatprep.subr.mxu0 0.0
    %107 = vmatpush1.msra.mxu0 0.0
    %108 = vmatprep.subr.mxu0 0.0
    %109 = vmatpush1.msra.mxu0 0.0
    %110 = vmatprep.subr.mxu0 0.0
    %111 = vmatpush1.msra.mxu0 0.0
    %112 = vmatprep.subr.mxu0 0.0
    %113 = vmatpush1.msra.mxu0 0.0
    %114 = vmatprep.subr.mxu0 0.0
    %115 = vmatpush1.msra.mxu0 0.0
    %116 = vmatprep.subr.mxu0 0.0
    %117 = vmatpush1.msra.mxu0 0.0
    %118 = vmatprep.subr.mxu0 0.0
    %119 = vmatpush1.msra.mxu0 0.0
    %120 = vmatprep.subr.mxu0 0.0
    %121 = vmatpush1.msra.mxu0 0.0
    %122 = vmatprep.subr.mxu0 0.0
    %123 = vmatpush1.msra.mxu0 0.0
    %124 = vmatprep.subr.mxu0 0.0
    %125 = vmatpush1.msra.mxu0 0.0
    %126 = vmatprep.subr.mxu0 0.0
    %127 = vmatpush1.msra.mxu0 0.0
    %128 = vmatprep.subr.mxu0 0.0
    %129 = vmatpush1.msra.mxu0 0.0
    %130 = vmatprep.subr.mxu0 0.0
    %131 = vmatpush1.msra.mxu0 0.0
    %132 = vmatprep.subr.mxu0 0.0
    %133 = vmatpush1.msra.mxu0 0.0
    %134 = vmatprep.subr.mxu0 0.0
    %135 = vmatpush1.msra.mxu0 0.0
    %136 = vmatprep.subr.mxu0 0.0
    %137 = vmatpush1.msra.mxu0 0.0
    %138 = vmatprep.mubr.f32.mxu0 0.0
    %139 = vmatmul.mubr.f32.gmra.mrb[0].mxu0 %v72
    %v140 = vpop.f32.mrb[0].mxu0
    %v141 = vadd.f32 %v68, %v140
    %v142 = vpop.f32.mrb[0].mxu0
    %143 = vdwg.mxu0
    %v144 = vadd.f32 %v63, %v141
    %v145 = vxor.u32 %v144, 2147483648
    %v146 = vmul.f32 %v145, 1.442695
    %v147 = vpow.pop %v146
    %v148 = vadd.f32 %v147, 1.0
    %v149 = vrcp.pop %v148
    %v150 = vmul.f32 1.0, %v149
    %152 = vrot.lane.b32.xlu0 %v141, 96
    %v153 = vpop.permute.xlu0 %152
    %v155 = vmul.f32 %v150, %v153
    %157 = vrot.lane.b32.xlu0 %v155, 32
    %v158 = vpop.permute.xlu0 %157
    %v160 = vadd.f32 %v63, %v158
    %v161 = vtanh.pop %v160
    %v162 = vmul.f32 %v150, %v61
    %v163 = vsub.f32 1.0, %v150
    %165 = vrot.lane.b32.xlu0 %v161, 64
    %v166 = vpop.permute.xlu0 %165
    %v168 = vmul.f32 %v163, %v166
    %v169 = vadd.f32 %v162, %v168
    %v171 = vlaneseq
    %v172 = vshrl.u32 %v171, 7
    %v173 = vsub.s32 0, %v172
    %v174 = vrot.slane %v59, %v173
    %v176 = vsub.f32 %v169, %v174
    %vm177 = vcmp.gt.f32.partialorder %v176, 0.0
    %v178 = vsel %vm177, 1.0, 0.0
    %v179 = vmul.f32 %v178, %v169
    %v180 = vmul.f32 %v178, %v174
    %v181 = vsub.f32 %v169, %v180
    %183 = vrot.lane.b32.xlu0 %v181, 32
    %v184 = vpop.permute.xlu0 %183
    %187 = vrot.lane.b32.xlu0 %v178, 64
    %v188 = vpop.permute.xlu0 %187
    %191 = vrot.lane.b32.xlu0 %v62, 96
    %v192 = vpop.permute.xlu0 %191
    %v194 = vsel %vm70, %v179, %v184
    %vm195 = vcmask 523264
    %v196 = vsel %vm195, %v194, %v188
    %vm197 = vcmask 785408
    %v198 = vsel %vm197, %v196, %v192
    %v199 = vsel %vm195, %v144, %v160
    %v200 = vsel %vm197, %v199, 0.0
    %201 = vst [vmem:[#allocation10] sm:$0xff] %v198
    %202 = vst [vmem:[#allocation10 + $0x8] sm:$0xff] %v200
    %s203 = scalar_lea.vmem [#allocation5], 8
    %v204 = vld [vmem:[%s203] sm:$0xff]
    %v206 = vsel %vm70, %v179, 0
    %208 = vmatprep.subr.mxu0 0.0
    %209 = vmatpush1.msra.mxu0 %v54
    %210 = vmatprep.subr.mxu0 0.0
    %211 = vmatpush1.msra.mxu0 %v55
    %212 = vmatprep.subr.mxu0 0.0
    %213 = vmatpush1.msra.mxu0 %v56
    %214 = vmatprep.subr.mxu0 0.0
    %215 = vmatpush1.msra.mxu0 %v57
    %216 = vmatprep.subr.mxu0 0.0
    %217 = vmatpush1.msra.mxu0 0.0
    %218 = vmatprep.subr.mxu0 0.0
    %219 = vmatpush1.msra.mxu0 0.0
    %220 = vmatprep.subr.mxu0 0.0
    %221 = vmatpush1.msra.mxu0 0.0
    %222 = vmatprep.subr.mxu0 0.0
    %223 = vmatpush1.msra.mxu0 0.0
    %224 = vmatprep.subr.mxu0 0.0
    %225 = vmatpush1.msra.mxu0 0.0
    %226 = vmatprep.subr.mxu0 0.0
    %227 = vmatpush1.msra.mxu0 0.0
    %228 = vmatprep.subr.mxu0 0.0
    %229 = vmatpush1.msra.mxu0 0.0
    %230 = vmatprep.subr.mxu0 0.0
    %231 = vmatpush1.msra.mxu0 0.0
    %232 = vmatprep.subr.mxu0 0.0
    %233 = vmatpush1.msra.mxu0 0.0
    %234 = vmatprep.subr.mxu0 0.0
    %235 = vmatpush1.msra.mxu0 0.0
    %236 = vmatprep.subr.mxu0 0.0
    %237 = vmatpush1.msra.mxu0 0.0
    %238 = vmatprep.subr.mxu0 0.0
    %239 = vmatpush1.msra.mxu0 0.0
    %240 = vmatprep.subr.mxu0 0.0
    %241 = vmatpush1.msra.mxu0 0.0
    %242 = vmatprep.subr.mxu0 0.0
    %243 = vmatpush1.msra.mxu0 0.0
    %244 = vmatprep.subr.mxu0 0.0
    %245 = vmatpush1.msra.mxu0 0.0
    %246 = vmatprep.subr.mxu0 0.0
    %247 = vmatpush1.msra.mxu0 0.0
    %248 = vmatprep.subr.mxu0 0.0
    %249 = vmatpush1.msra.mxu0 0.0
    %250 = vmatprep.subr.mxu0 0.0
    %251 = vmatpush1.msra.mxu0 0.0
    %252 = vmatprep.subr.mxu0 0.0
    %253 = vmatpush1.msra.mxu0 0.0
    %254 = vmatprep.subr.mxu0 0.0
    %255 = vmatpush1.msra.mxu0 0.0
    %256 = vmatprep.subr.mxu0 0.0
    %257 = vmatpush1.msra.mxu0 0.0
    %258 = vmatprep.subr.mxu0 0.0
    %259 = vmatpush1.msra.mxu0 0.0
    %260 = vmatprep.subr.mxu0 0.0
    %261 = vmatpush1.msra.mxu0 0.0
    %262 = vmatprep.subr.mxu0 0.0
    %263 = vmatpush1.msra.mxu0 0.0
    %264 = vmatprep.subr.mxu0 0.0
    %265 = vmatpush1.msra.mxu0 0.0
    %266 = vmatprep.subr.mxu0 0.0
    %267 = vmatpush1.msra.mxu0 0.0
    %268 = vmatprep.subr.mxu0 0.0
    %269 = vmatpush1.msra.mxu0 0.0
    %270 = vmatprep.subr.mxu0 0.0
    %271 = vmatpush1.msra.mxu0 0.0
    %272 = vmatprep.mubr.f32.mxu0 0.0
    %273 = vmatmul.mubr.f32.gmra.mrb[0].mxu0 %v206
    %v274 = vpop.f32.mrb[0].mxu0
    %v275 = vadd.f32 %v68, %v274
    %v276 = vpop.f32.mrb[0].mxu0
    %277 = vdwg.mxu0
    %v278 = vadd.f32 %v204, %v275
    %v279 = vxor.u32 %v278, 2147483648
    %v280 = vmul.f32 %v279, 1.442695
    %v281 = vpow.pop %v280
    %v282 = vadd.f32 %v281, 1.0
    %v283 = vrcp.pop %v282
    %v284 = vmul.f32 1.0, %v283
    %286 = vrot.lane.b32.xlu0 %v275, 96
    %v287 = vpop.permute.xlu0 %286
    %v289 = vmul.f32 %v284, %v287
    %291 = vrot.lane.b32.xlu0 %v289, 32
    %v292 = vpop.permute.xlu0 %291
    %v294 = vadd.f32 %v204, %v292
    %v295 = vtanh.pop %v294
    %v296 = vmul.f32 %v284, %v181
    %v297 = vsub.f32 1.0, %v284
    %299 = vrot.lane.b32.xlu0 %v295, 64
    %v300 = vpop.permute.xlu0 %299
    %v302 = vmul.f32 %v297, %v300
    %v303 = vadd.f32 %v296, %v302
    %v304 = vsub.f32 %v303, %v174
    %vm305 = vcmp.gt.f32.partialorder %v304, 0.0
    %v306 = vsel %vm305, 1.0, 0.0
    %v307 = vmul.f32 %v306, %v303
    %v308 = vmul.f32 %v306, %v174
    %v309 = vsub.f32 %v303, %v308
    %311 = vrot.lane.b32.xlu0 %v309, 32
    %v312 = vpop.permute.xlu0 %311
    %315 = vrot.lane.b32.xlu0 %v306, 64
    %v316 = vpop.permute.xlu0 %315
    %v318 = vsel %vm70, %v307, %v312
    %v319 = vsel %vm195, %v318, %v316
    %v320 = vsel %vm197, %v319, %v192
    %v321 = vsel %vm195, %v278, %v294
    %v322 = vsel %vm197, %v321, 0.0
    %s323 = scalar_lea.vmem [#allocation10], 16
    %324 = vst [vmem:[%s323] sm:$0xff] %v320
    %325 = vst [vmem:[%s323 + $0x8] sm:$0xff] %v322
    %s326 = scalar_lea.vmem [#allocation5], 16
    %v327 = vld [vmem:[%s326] sm:$0xff]
    %v329 = vsel %vm70, %v307, 0
    %331 = vmatprep.subr.mxu0 0.0
    %332 = vmatpush1.msra.mxu0 %v54
    %333 = vmatprep.subr.mxu0 0.0
    %334 = vmatpush1.msra.mxu0 %v55
    %335 = vmatprep.subr.mxu0 0.0
    %336 = vmatpush1.msra.mxu0 %v56
    %337 = vmatprep.subr.mxu0 0.0
    %338 = vmatpush1.msra.mxu0 %v57
    %339 = vmatprep.subr.mxu0 0.0
    %340 = vmatpush1.msra.mxu0 0.0
    %341 = vmatprep.subr.mxu0 0.0
    %342 = vmatpush1.msra.mxu0 0.0
    %343 = vmatprep.subr.mxu0 0.0
    %344 = vmatpush1.msra.mxu0 0.0
    %345 = vmatprep.subr.mxu0 0.0
    %346 = vmatpush1.msra.mxu0 0.0
    %347 = vmatprep.subr.mxu0 0.0
    %348 = vmatpush1.msra.mxu0 0.0
    %349 = vmatprep.subr.mxu0 0.0
    %350 = vmatpush1.msra.mxu0 0.0
    %351 = vmatprep.subr.mxu0 0.0
    %352 = vmatpush1.msra.mxu0 0.0
    %353 = vmatprep.subr.mxu0 0.0
    %354 = vmatpush1.msra.mxu0 0.0
    %355 = vmatprep.subr.mxu0 0.0
    %356 = vmatpush1.msra.mxu0 0.0
    %357 = vmatprep.subr.mxu0 0.0
    %358 = vmatpush1.msra.mxu0 0.0
    %359 = vmatprep.subr.mxu0 0.0
    %360 = vmatpush1.msra.mxu0 0.0
    %361 = vmatprep.subr.mxu0 0.0
    %362 = vmatpush1.msra.mxu0 0.0
    %363 = vmatprep.subr.mxu0 0.0
    %364 = vmatpush1.msra.mxu0 0.0
    %365 = vmatprep.subr.mxu0 0.0
    %366 = vmatpush1.msra.mxu0 0.0
    %367 = vmatprep.subr.mxu0 0.0
    %368 = vmatpush1.msra.mxu0 0.0
    %369 = vmatprep.subr.mxu0 0.0
    %370 = vmatpush1.msra.mxu0 0.0
    %371 = vmatprep.subr.mxu0 0.0
    %372 = vmatpush1.msra.mxu0 0.0
    %373 = vmatprep.subr.mxu0 0.0
    %374 = vmatpush1.msra.mxu0 0.0
    %375 = vmatprep.subr.mxu0 0.0
    %376 = vmatpush1.msra.mxu0 0.0
    %377 = vmatprep.subr.mxu0 0.0
    %378 = vmatpush1.msra.mxu0 0.0
    %379 = vmatprep.subr.mxu0 0.0
    %380 = vmatpush1.msra.mxu0 0.0
    %381 = vmatprep.subr.mxu0 0.0
    %382 = vmatpush1.msra.mxu0 0.0
    %383 = vmatprep.subr.mxu0 0.0
    %384 = vmatpush1.msra.mxu0 0.0
    %385 = vmatprep.subr.mxu0 0.0
    %386 = vmatpush1.msra.mxu0 0.0
    %387 = vmatprep.subr.mxu0 0.0
    %388 = vmatpush1.msra.mxu0 0.0
    %389 = vmatprep.subr.mxu0 0.0
    %390 = vmatpush1.msra.mxu0 0.0
    %391 = vmatprep.subr.mxu0 0.0
    %392 = vmatpush1.msra.mxu0 0.0
    %393 = vmatprep.subr.mxu0 0.0
    %394 = vmatpush1.msra.mxu0 0.0
    %395 = vmatprep.mubr.f32.mxu0 0.0
    %396 = vmatmul.mubr.f32.gmra.mrb[0].mxu0 %v329
    %v397 = vpop.f32.mrb[0].mxu0
    %v398 = vadd.f32 %v68, %v397
    %v399 = vpop.f32.mrb[0].mxu0
    %400 = vdwg.mxu0
    %v401 = vadd.f32 %v327, %v398
    %v402 = vxor.u32 %v401, 2147483648
    %v403 = vmul.f32 %v402, 1.442695
    %v404 = vpow.pop %v403
    %v405 = vadd.f32 %v404, 1.0
    %v406 = vrcp.pop %v405
    %v407 = vmul.f32 1.0, %v406
    %409 = vrot.lane.b32.xlu0 %v398, 96
    %v410 = vpop.permute.xlu0 %409
    %v412 = vmul.f32 %v407, %v410
    %414 = vrot.lane.b32.xlu0 %v412, 32
    %v415 = vpop.permute.xlu0 %414
    %v417 = vadd.f32 %v327, %v415
    %v418 = vtanh.pop %v417
    %v419 = vmul.f32 %v407, %v309
    %v420 = vsub.f32 1.0, %v407
    %422 = vrot.lane.b32.xlu0 %v418, 64
    %v423 = vpop.permute.xlu0 %422
    %v425 = vmul.f32 %v420, %v423
    %v426 = vadd.f32 %v419, %v425
    %v427 = vsub.f32 %v426, %v174
    %vm428 = vcmp.gt.f32.partialorder %v427, 0.0
    %v429 = vsel %vm428, 1.0, 0.0
    %v430 = vmul.f32 %v429, %v426
    %v431 = vmul.f32 %v429, %v174
    %v432 = vsub.f32 %v426, %v431
    %434 = vrot.lane.b32.xlu0 %v432, 32
    %v435 = vpop.permute.xlu0 %434
    %438 = vrot.lane.b32.xlu0 %v429, 64
    %v439 = vpop.permute.xlu0 %438
    %v441 = vsel %vm70, %v430, %v435
    %v442 = vsel %vm195, %v441, %v439
    %v443 = vsel %vm197, %v442, %v192
    %v444 = vsel %vm195, %v401, %v417
    %v445 = vsel %vm197, %v444, 0.0
    %s446 = scalar_lea.vmem [#allocation10], 32
    %447 = vst [vmem:[%s446] sm:$0xff] %v443
    %448 = vst [vmem:[%s446 + $0x8] sm:$0xff] %v445
    %s449 = scalar_lea.vmem [#allocation5], 24
    %v450 = vld [vmem:[%s449] sm:$0xff]
    %v452 = vsel %vm70, %v430, 0
    %454 = vmatprep.subr.mxu0 0.0
    %455 = vmatpush1.msra.mxu0 %v54
    %456 = vmatprep.subr.mxu0 0.0
    %457 = vmatpush1.msra.mxu0 %v55
    %458 = vmatprep.subr.mxu0 0.0
    %459 = vmatpush1.msra.mxu0 %v56
    %460 = vmatprep.subr.mxu0 0.0
    %461 = vmatpush1.msra.mxu0 %v57
    %462 = vmatprep.subr.mxu0 0.0
    %463 = vmatpush1.msra.mxu0 0.0
    %464 = vmatprep.subr.mxu0 0.0
    %465 = vmatpush1.msra.mxu0 0.0
    %466 = vmatprep.subr.mxu0 0.0
    %467 = vmatpush1.msra.mxu0 0.0
    %468 = vmatprep.subr.mxu0 0.0
    %469 = vmatpush1.msra.mxu0 0.0
    %470 = vmatprep.subr.mxu0 0.0
    %471 = vmatpush1.msra.mxu0 0.0
    %472 = vmatprep.subr.mxu0 0.0
    %473 = vmatpush1.msra.mxu0 0.0
    %474 = vmatprep.subr.mxu0 0.0
    %475 = vmatpush1.msra.mxu0 0.0
    %476 = vmatprep.subr.mxu0 0.0
    %477 = vmatpush1.msra.mxu0 0.0
    %478 = vmatprep.subr.mxu0 0.0
    %479 = vmatpush1.msra.mxu0 0.0
    %480 = vmatprep.subr.mxu0 0.0
    %481 = vmatpush1.msra.mxu0 0.0
    %482 = vmatprep.subr.mxu0 0.0
    %483 = vmatpush1.msra.mxu0 0.0
    %484 = vmatprep.subr.mxu0 0.0
    %485 = vmatpush1.msra.mxu0 0.0
    %486 = vmatprep.subr.mxu0 0.0
    %487 = vmatpush1.msra.mxu0 0.0
    %488 = vmatprep.subr.mxu0 0.0
    %489 = vmatpush1.msra.mxu0 0.0
    %490 = vmatprep.subr.mxu0 0.0
    %491 = vmatpush1.msra.mxu0 0.0
    %492 = vmatprep.subr.mxu0 0.0
    %493 = vmatpush1.msra.mxu0 0.0
    %494 = vmatprep.subr.mxu0 0.0
    %495 = vmatpush1.msra.mxu0 0.0
    %496 = vmatprep.subr.mxu0 0.0
    %497 = vmatpush1.msra.mxu0 0.0
    %498 = vmatprep.subr.mxu0 0.0
    %499 = vmatpush1.msra.mxu0 0.0
    %500 = vmatprep.subr.mxu0 0.0
    %501 = vmatpush1.msra.mxu0 0.0
    %502 = vmatprep.subr.mxu0 0.0
    %503 = vmatpush1.msra.mxu0 0.0
    %504 = vmatprep.subr.mxu0 0.0
    %505 = vmatpush1.msra.mxu0 0.0
    %506 = vmatprep.subr.mxu0 0.0
    %507 = vmatpush1.msra.mxu0 0.0
    %508 = vmatprep.subr.mxu0 0.0
    %509 = vmatpush1.msra.mxu0 0.0
    %510 = vmatprep.subr.mxu0 0.0
    %511 = vmatpush1.msra.mxu0 0.0
    %512 = vmatprep.subr.mxu0 0.0
    %513 = vmatpush1.msra.mxu0 0.0
    %514 = vmatprep.subr.mxu0 0.0
    %515 = vmatpush1.msra.mxu0 0.0
    %516 = vmatprep.subr.mxu0 0.0
    %517 = vmatpush1.msra.mxu0 0.0
    %518 = vmatprep.mubr.f32.mxu0 0.0
    %519 = vmatmul.mubr.f32.gmra.mrb[0].mxu0 %v452
    %v520 = vpop.f32.mrb[0].mxu0
    %v521 = vadd.f32 %v68, %v520
    %v522 = vpop.f32.mrb[0].mxu0
    %523 = vdwg.mxu0
    %v524 = vadd.f32 %v450, %v521
    %v525 = vxor.u32 %v524, 2147483648
    %v526 = vmul.f32 %v525, 1.442695
    %v527 = vpow.pop %v526
    %v528 = vadd.f32 %v527, 1.0
    %v529 = vrcp.pop %v528
    %v530 = vmul.f32 1.0, %v529
    %532 = vrot.lane.b32.xlu0 %v521, 96
    %v533 = vpop.permute.xlu0 %532
    %v535 = vmul.f32 %v530, %v533
    %537 = vrot.lane.b32.xlu0 %v535, 32
    %v538 = vpop.permute.xlu0 %537
    %v540 = vadd.f32 %v450, %v538
    %v541 = vtanh.pop %v540
    %v542 = vmul.f32 %v530, %v432
    %v543 = vsub.f32 1.0, %v530
    %545 = vrot.lane.b32.xlu0 %v541, 64
    %v546 = vpop.permute.xlu0 %545
    %v548 = vmul.f32 %v543, %v546
    %v549 = vadd.f32 %v542, %v548
    %v550 = vsub.f32 %v549, %v174
    %vm551 = vcmp.gt.f32.partialorder %v550, 0.0
    %v552 = vsel %vm551, 1.0, 0.0
    %v553 = vmul.f32 %v552, %v549
    %v554 = vmul.f32 %v552, %v174
    %v555 = vsub.f32 %v549, %v554
    %557 = vrot.lane.b32.xlu0 %v555, 32
    %v558 = vpop.permute.xlu0 %557
    %561 = vrot.lane.b32.xlu0 %v552, 64
    %v562 = vpop.permute.xlu0 %561
    %v564 = vsel %vm70, %v553, %v558
    %v565 = vsel %vm195, %v564, %v562
    %v566 = vsel %vm197, %v565, %v192
    %v567 = vsel %vm195, %v524, %v540
    %v568 = vsel %vm197, %v567, 0.0
    %s569 = scalar_lea.vmem [#allocation10], 48
    %570 = vst [vmem:[%s569] sm:$0xff] %v566
    %571 = vst [vmem:[%s569 + $0x8] sm:$0xff] %v568
    %s572 = scalar_lea.vmem [#allocation5], 32
    %v573 = vld [vmem:[%s572] sm:$0xff]
    %v575 = vsel %vm70, %v553, 0
    %577 = vmatprep.subr.mxu0 0.0
    %578 = vmatpush1.msra.mxu0 %v54
    %579 = vmatprep.subr.mxu0 0.0
    %580 = vmatpush1.msra.mxu0 %v55
    %581 = vmatprep.subr.mxu0 0.0
    %582 = vmatpush1.msra.mxu0 %v56
    %583 = vmatprep.subr.mxu0 0.0
    %584 = vmatpush1.msra.mxu0 %v57
    %585 = vmatprep.subr.mxu0 0.0
    %586 = vmatpush1.msra.mxu0 0.0
    %587 = vmatprep.subr.mxu0 0.0
    %588 = vmatpush1.msra.mxu0 0.0
    %589 = vmatprep.subr.mxu0 0.0
    %590 = vmatpush1.msra.mxu0 0.0
    %591 = vmatprep.subr.mxu0 0.0
    %592 = vmatpush1.msra.mxu0 0.0
    %593 = vmatprep.subr.mxu0 0.0
    %594 = vmatpush1.msra.mxu0 0.0
    %595 = vmatprep.subr.mxu0 0.0
    %596 = vmatpush1.msra.mxu0 0.0
    %597 = vmatprep.subr.mxu0 0.0
    %598 = vmatpush1.msra.mxu0 0.0
    %599 = vmatprep.subr.mxu0 0.0
    %600 = vmatpush1.msra.mxu0 0.0
    %601 = vmatprep.subr.mxu0 0.0
    %602 = vmatpush1.msra.mxu0 0.0
    %603 = vmatprep.subr.mxu0 0.0
    %604 = vmatpush1.msra.mxu0 0.0
    %605 = vmatprep.subr.mxu0 0.0
    %606 = vmatpush1.msra.mxu0 0.0
    %607 = vmatprep.subr.mxu0 0.0
    %608 = vmatpush1.msra.mxu0 0.0
    %609 = vmatprep.subr.mxu0 0.0
    %610 = vmatpush1.msra.mxu0 0.0
    %611 = vmatprep.subr.mxu0 0.0
    %612 = vmatpush1.msra.mxu0 0.0
    %613 = vmatprep.subr.mxu0 0.0
    %614 = vmatpush1.msra.mxu0 0.0
    %615 = vmatprep.subr.mxu0 0.0
    %616 = vmatpush1.msra.mxu0 0.0
    %617 = vmatprep.subr.mxu0 0.0
    %618 = vmatpush1.msra.mxu0 0.0
    %619 = vmatprep.subr.mxu0 0.0
    %620 = vmatpush1.msra.mxu0 0.0
    %621 = vmatprep.subr.mxu0 0.0
    %622 = vmatpush1.msra.mxu0 0.0
    %623 = vmatprep.subr.mxu0 0.0
    %624 = vmatpush1.msra.mxu0 0.0
    %625 = vmatprep.subr.mxu0 0.0
    %626 = vmatpush1.msra.mxu0 0.0
    %627 = vmatprep.subr.mxu0 0.0
    %628 = vmatpush1.msra.mxu0 0.0
    %629 = vmatprep.subr.mxu0 0.0
    %630 = vmatpush1.msra.mxu0 0.0
    %631 = vmatprep.subr.mxu0 0.0
    %632 = vmatpush1.msra.mxu0 0.0
    %633 = vmatprep.subr.mxu0 0.0
    %634 = vmatpush1.msra.mxu0 0.0
    %635 = vmatprep.subr.mxu0 0.0
    %636 = vmatpush1.msra.mxu0 0.0
    %637 = vmatprep.subr.mxu0 0.0
    %638 = vmatpush1.msra.mxu0 0.0
    %639 = vmatprep.subr.mxu0 0.0
    %640 = vmatpush1.msra.mxu0 0.0
    %641 = vmatprep.mubr.f32.mxu0 0.0
    %642 = vmatmul.mubr.f32.gmra.mrb[0].mxu0 %v575
    %v643 = vpop.f32.mrb[0].mxu0
    %v644 = vadd.f32 %v68, %v643
    %v645 = vpop.f32.mrb[0].mxu0
    %646 = vdwg.mxu0
    %v647 = vadd.f32 %v573, %v644
    %v648 = vxor.u32 %v647, 2147483648
    %v649 = vmul.f32 %v648, 1.442695
    %v650 = vpow.pop %v649
    %v651 = vadd.f32 %v650, 1.0
    %v652 = vrcp.pop %v651
    %v653 = vmul.f32 1.0, %v652
    %655 = vrot.lane.b32.xlu0 %v644, 96
    %v656 = vpop.permute.xlu0 %655
    %v658 = vmul.f32 %v653, %v656
    %660 = vrot.lane.b32.xlu0 %v658, 32
    %v661 = vpop.permute.xlu0 %660
    %v663 = vadd.f32 %v573, %v661
    %v664 = vtanh.pop %v663
    %v665 = vmul.f32 %v653, %v555
    %v666 = vsub.f32 1.0, %v653
    %668 = vrot.lane.b32.xlu0 %v664, 64
    %v669 = vpop.permute.xlu0 %668
    %v671 = vmul.f32 %v666, %v669
    %v672 = vadd.f32 %v665, %v671
    %v673 = vsub.f32 %v672, %v174
    %vm674 = vcmp.gt.f32.partialorder %v673, 0.0
    %v675 = vsel %vm674, 1.0, 0.0
    %v676 = vmul.f32 %v675, %v672
    %v677 = vmul.f32 %v675, %v174
    %v678 = vsub.f32 %v672, %v677
    %680 = vrot.lane.b32.xlu0 %v678, 32
    %v681 = vpop.permute.xlu0 %680
    %684 = vrot.lane.b32.xlu0 %v675, 64
    %v685 = vpop.permute.xlu0 %684
    %v687 = vsel %vm70, %v676, %v681
    %v688 = vsel %vm195, %v687, %v685
    %v689 = vsel %vm197, %v688, %v192
    %v690 = vsel %vm195, %v647, %v663
    %v691 = vsel %vm197, %v690, 0.0
    %s692 = scalar_lea.vmem [#allocation10], 64
    %693 = vst [vmem:[%s692] sm:$0xff] %v689
    %694 = vst [vmem:[%s692 + $0x8] sm:$0xff] %v691
    %s695 = scalar_lea.vmem [#allocation5], 40
    %v696 = vld [vmem:[%s695] sm:$0xff]
    %v698 = vsel %vm70, %v676, 0
    %700 = vmatprep.subr.mxu0 0.0
    %701 = vmatpush1.msra.mxu0 %v54
    %702 = vmatprep.subr.mxu0 0.0
    %703 = vmatpush1.msra.mxu0 %v55
    %704 = vmatprep.subr.mxu0 0.0
    %705 = vmatpush1.msra.mxu0 %v56
    %706 = vmatprep.subr.mxu0 0.0
    %707 = vmatpush1.msra.mxu0 %v57
    %708 = vmatprep.subr.mxu0 0.0
    %709 = vmatpush1.msra.mxu0 0.0
    %710 = vmatprep.subr.mxu0 0.0
    %711 = vmatpush1.msra.mxu0 0.0
    %712 = vmatprep.subr.mxu0 0.0
    %713 = vmatpush1.msra.mxu0 0.0
    %714 = vmatprep.subr.mxu0 0.0
    %715 = vmatpush1.msra.mxu0 0.0
    %716 = vmatprep.subr.mxu0 0.0
    %717 = vmatpush1.msra.mxu0 0.0
    %718 = vmatprep.subr.mxu0 0.0
    %719 = vmatpush1.msra.mxu0 0.0
    %720 = vmatprep.subr.mxu0 0.0
    %721 = vmatpush1.msra.mxu0 0.0
    %722 = vmatprep.subr.mxu0 0.0
    %723 = vmatpush1.msra.mxu0 0.0
    %724 = vmatprep.subr.mxu0 0.0
    %725 = vmatpush1.msra.mxu0 0.0
    %726 = vmatprep.subr.mxu0 0.0
    %727 = vmatpush1.msra.mxu0 0.0
    %728 = vmatprep.subr.mxu0 0.0
    %729 = vmatpush1.msra.mxu0 0.0
    %730 = vmatprep.subr.mxu0 0.0
    %731 = vmatpush1.msra.mxu0 0.0
    %732 = vmatprep.subr.mxu0 0.0
    %733 = vmatpush1.msra.mxu0 0.0
    %734 = vmatprep.subr.mxu0 0.0
    %735 = vmatpush1.msra.mxu0 0.0
    %736 = vmatprep.subr.mxu0 0.0
    %737 = vmatpush1.msra.mxu0 0.0
    %738 = vmatprep.subr.mxu0 0.0
    %739 = vmatpush1.msra.mxu0 0.0
    %740 = vmatprep.subr.mxu0 0.0
    %741 = vmatpush1.msra.mxu0 0.0
    %742 = vmatprep.subr.mxu0 0.0
    %743 = vmatpush1.msra.mxu0 0.0
    %744 = vmatprep.subr.mxu0 0.0
    %745 = vmatpush1.msra.mxu0 0.0
    %746 = vmatprep.subr.mxu0 0.0
    %747 = vmatpush1.msra.mxu0 0.0
    %748 = vmatprep.subr.mxu0 0.0
    %749 = vmatpush1.msra.mxu0 0.0
    %750 = vmatprep.subr.mxu0 0.0
    %751 = vmatpush1.msra.mxu0 0.0
    %752 = vmatprep.subr.mxu0 0.0
    %753 = vmatpush1.msra.mxu0 0.0
    %754 = vmatprep.subr.mxu0 0.0
    %755 = vmatpush1.msra.mxu0 0.0
    %756 = vmatprep.subr.mxu0 0.0
    %757 = vmatpush1.msra.mxu0 0.0
    %758 = vmatprep.subr.mxu0 0.0
    %759 = vmatpush1.msra.mxu0 0.0
    %760 = vmatprep.subr.mxu0 0.0
    %761 = vmatpush1.msra.mxu0 0.0
    %762 = vmatprep.subr.mxu0 0.0
    %763 = vmatpush1.msra.mxu0 0.0
    %764 = vmatprep.mubr.f32.mxu0 0.0
    %765 = vmatmul.mubr.f32.gmra.mrb[0].mxu0 %v698
    %v766 = vpop.f32.mrb[0].mxu0
    %v767 = vadd.f32 %v68, %v766
    %v768 = vpop.f32.mrb[0].mxu0
    %769 = vdwg.mxu0
    %v770 = vadd.f32 %v696, %v767
    %v771 = vxor.u32 %v770, 2147483648
    %v772 = vmul.f32 %v771, 1.442695
    %v773 = vpow.pop %v772
    %v774 = vadd.f32 %v773, 1.0
    %v775 = vrcp.pop %v774
    %v776 = vmul.f32 1.0, %v775
    %778 = vrot.lane.b32.xlu0 %v767, 96
    %v779 = vpop.permute.xlu0 %778
    %v781 = vmul.f32 %v776, %v779
    %783 = vrot.lane.b32.xlu0 %v781, 32
    %v784 = vpop.permute.xlu0 %783
    %v786 = vadd.f32 %v696, %v784
    %v787 = vtanh.pop %v786
    %v788 = vmul.f32 %v776, %v678
    %v789 = vsub.f32 1.0, %v776
    %791 = vrot.lane.b32.xlu0 %v787, 64
    %v792 = vpop.permute.xlu0 %791
    %v794 = vmul.f32 %v789, %v792
    %v795 = vadd.f32 %v788, %v794
    %v796 = vsub.f32 %v795, %v174
    %vm797 = vcmp.gt.f32.partialorder %v796, 0.0
    %v798 = vsel %vm797, 1.0, 0.0
    %v799 = vmul.f32 %v798, %v795
    %v800 = vmul.f32 %v798, %v174
    %v801 = vsub.f32 %v795, %v800
    %803 = vrot.lane.b32.xlu0 %v801, 32
    %v804 = vpop.permute.xlu0 %803
    %807 = vrot.lane.b32.xlu0 %v798, 64
    %v808 = vpop.permute.xlu0 %807
    %v810 = vsel %vm70, %v799, %v804
    %v811 = vsel %vm195, %v810, %v808
    %v812 = vsel %vm197, %v811, %v192
    %v813 = vsel %vm195, %v770, %v786
    %v814 = vsel %vm197, %v813, 0.0
    %s815 = scalar_lea.vmem [#allocation10], 80
    %816 = vst [vmem:[%s815] sm:$0xff] %v812
    %817 = vst [vmem:[%s815 + $0x8] sm:$0xff] %v814
    %s818 = scalar_lea.vmem [#allocation5], 48
    %v819 = vld [vmem:[%s818] sm:$0xff]
    %v821 = vsel %vm70, %v799, 0
    %823 = vmatprep.subr.mxu0 0.0
    %824 = vmatpush1.msra.mxu0 %v54
    %825 = vmatprep.subr.mxu0 0.0
    %826 = vmatpush1.msra.mxu0 %v55
    %827 = vmatprep.subr.mxu0 0.0
    %828 = vmatpush1.msra.mxu0 %v56
    %829 = vmatprep.subr.mxu0 0.0
    %830 = vmatpush1.msra.mxu0 %v57
    %831 = vmatprep.subr.mxu0 0.0
    %832 = vmatpush1.msra.mxu0 0.0
    %833 = vmatprep.subr.mxu0 0.0
    %834 = vmatpush1.msra.mxu0 0.0
    %835 = vmatprep.subr.mxu0 0.0
    %836 = vmatpush1.msra.mxu0 0.0
    %837 = vmatprep.subr.mxu0 0.0
    %838 = vmatpush1.msra.mxu0 0.0
    %839 = vmatprep.subr.mxu0 0.0
    %840 = vmatpush1.msra.mxu0 0.0
    %841 = vmatprep.subr.mxu0 0.0
    %842 = vmatpush1.msra.mxu0 0.0
    %843 = vmatprep.subr.mxu0 0.0
    %844 = vmatpush1.msra.mxu0 0.0
    %845 = vmatprep.subr.mxu0 0.0
    %846 = vmatpush1.msra.mxu0 0.0
    %847 = vmatprep.subr.mxu0 0.0
    %848 = vmatpush1.msra.mxu0 0.0
    %849 = vmatprep.subr.mxu0 0.0
    %850 = vmatpush1.msra.mxu0 0.0
    %851 = vmatprep.subr.mxu0 0.0
    %852 = vmatpush1.msra.mxu0 0.0
    %853 = vmatprep.subr.mxu0 0.0
    %854 = vmatpush1.msra.mxu0 0.0
    %855 = vmatprep.subr.mxu0 0.0
    %856 = vmatpush1.msra.mxu0 0.0
    %857 = vmatprep.subr.mxu0 0.0
    %858 = vmatpush1.msra.mxu0 0.0
    %859 = vmatprep.subr.mxu0 0.0
    %860 = vmatpush1.msra.mxu0 0.0
    %861 = vmatprep.subr.mxu0 0.0
    %862 = vmatpush1.msra.mxu0 0.0
    %863 = vmatprep.subr.mxu0 0.0
    %864 = vmatpush1.msra.mxu0 0.0
    %865 = vmatprep.subr.mxu0 0.0
    %866 = vmatpush1.msra.mxu0 0.0
    %867 = vmatprep.subr.mxu0 0.0
    %868 = vmatpush1.msra.mxu0 0.0
    %869 = vmatprep.subr.mxu0 0.0
    %870 = vmatpush1.msra.mxu0 0.0
    %871 = vmatprep.subr.mxu0 0.0
    %872 = vmatpush1.msra.mxu0 0.0
    %873 = vmatprep.subr.mxu0 0.0
    %874 = vmatpush1.msra.mxu0 0.0
    %875 = vmatprep.subr.mxu0 0.0
    %876 = vmatpush1.msra.mxu0 0.0
    %877 = vmatprep.subr.mxu0 0.0
    %878 = vmatpush1.msra.mxu0 0.0
    %879 = vmatprep.subr.mxu0 0.0
    %880 = vmatpush1.msra.mxu0 0.0
    %881 = vmatprep.subr.mxu0 0.0
    %882 = vmatpush1.msra.mxu0 0.0
    %883 = vmatprep.subr.mxu0 0.0
    %884 = vmatpush1.msra.mxu0 0.0
    %885 = vmatprep.subr.mxu0 0.0
    %886 = vmatpush1.msra.mxu0 0.0
    %887 = vmatprep.mubr.f32.mxu0 0.0
    %888 = vmatmul.mubr.f32.gmra.mrb[0].mxu0 %v821
    %v889 = vpop.f32.mrb[0].mxu0
    %v890 = vadd.f32 %v68, %v889
    %v891 = vpop.f32.mrb[0].mxu0
    %892 = vdwg.mxu0
    %v893 = vadd.f32 %v819, %v890
    %v894 = vxor.u32 %v893, 2147483648
    %v895 = vmul.f32 %v894, 1.442695
    %v896 = vpow.pop %v895
    %v897 = vadd.f32 %v896, 1.0
    %v898 = vrcp.pop %v897
    %v899 = vmul.f32 1.0, %v898
    %901 = vrot.lane.b32.xlu0 %v890, 96
    %v902 = vpop.permute.xlu0 %901
    %v904 = vmul.f32 %v899, %v902
    %906 = vrot.lane.b32.xlu0 %v904, 32
    %v907 = vpop.permute.xlu0 %906
    %v909 = vadd.f32 %v819, %v907
    %v910 = vtanh.pop %v909
    %v911 = vmul.f32 %v899, %v801
    %v912 = vsub.f32 1.0, %v899
    %914 = vrot.lane.b32.xlu0 %v910, 64
    %v915 = vpop.permute.xlu0 %914
    %v917 = vmul.f32 %v912, %v915
    %v918 = vadd.f32 %v911, %v917
    %v919 = vsub.f32 %v918, %v174
    %vm920 = vcmp.gt.f32.partialorder %v919, 0.0
    %v921 = vsel %vm920, 1.0, 0.0
    %v922 = vmul.f32 %v921, %v918
    %v923 = vmul.f32 %v921, %v174
    %v924 = vsub.f32 %v918, %v923
    %926 = vrot.lane.b32.xlu0 %v924, 32
    %v927 = vpop.permute.xlu0 %926
    %930 = vrot.lane.b32.xlu0 %v921, 64
    %v931 = vpop.permute.xlu0 %930
    %v933 = vsel %vm70, %v922, %v927
    %v934 = vsel %vm195, %v933, %v931
    %v935 = vsel %vm197, %v934, %v192
    %v936 = vsel %vm195, %v893, %v909
    %v937 = vsel %vm197, %v936, 0.0
    %s938 = scalar_lea.vmem [#allocation10], 96
    %939 = vst [vmem:[%s938] sm:$0xff] %v935
    %940 = vst [vmem:[%s938 + $0x8] sm:$0xff] %v937
    %s941 = scalar_lea.vmem [#allocation5], 56
    %v942 = vld [vmem:[%s941] sm:$0xff]
    %v944 = vsel %vm70, %v922, 0
    %946 = vmatprep.subr.mxu0 0.0
    %947 = vmatpush1.msra.mxu0 %v54
    %948 = vmatprep.subr.mxu0 0.0
    %949 = vmatpush1.msra.mxu0 %v55
    %950 = vmatprep.subr.mxu0 0.0
    %951 = vmatpush1.msra.mxu0 %v56
    %952 = vmatprep.subr.mxu0 0.0
    %953 = vmatpush1.msra.mxu0 %v57
    %954 = vmatprep.subr.mxu0 0.0
    %955 = vmatpush1.msra.mxu0 0.0
    %956 = vmatprep.subr.mxu0 0.0
    %957 = vmatpush1.msra.mxu0 0.0
    %958 = vmatprep.subr.mxu0 0.0
    %959 = vmatpush1.msra.mxu0 0.0
    %960 = vmatprep.subr.mxu0 0.0
    %961 = vmatpush1.msra.mxu0 0.0
    %962 = vmatprep.subr.mxu0 0.0
    %963 = vmatpush1.msra.mxu0 0.0
    %964 = vmatprep.subr.mxu0 0.0
    %965 = vmatpush1.msra.mxu0 0.0
    %966 = vmatprep.subr.mxu0 0.0
    %967 = vmatpush1.msra.mxu0 0.0
    %968 = vmatprep.subr.mxu0 0.0
    %969 = vmatpush1.msra.mxu0 0.0
    %970 = vmatprep.subr.mxu0 0.0
    %971 = vmatpush1.msra.mxu0 0.0
    %972 = vmatprep.subr.mxu0 0.0
    %973 = vmatpush1.msra.mxu0 0.0
    %974 = vmatprep.subr.mxu0 0.0
    %975 = vmatpush1.msra.mxu0 0.0
    %976 = vmatprep.subr.mxu0 0.0
    %977 = vmatpush1.msra.mxu0 0.0
    %978 = vmatprep.subr.mxu0 0.0
    %979 = vmatpush1.msra.mxu0 0.0
    %980 = vmatprep.subr.mxu0 0.0
    %981 = vmatpush1.msra.mxu0 0.0
    %982 = vmatprep.subr.mxu0 0.0
    %983 = vmatpush1.msra.mxu0 0.0
    %984 = vmatprep.subr.mxu0 0.0
    %985 = vmatpush1.msra.mxu0 0.0
    %986 = vmatprep.subr.mxu0 0.0
    %987 = vmatpush1.msra.mxu0 0.0
    %988 = vmatprep.subr.mxu0 0.0
    %989 = vmatpush1.msra.mxu0 0.0
    %990 = vmatprep.subr.mxu0 0.0
    %991 = vmatpush1.msra.mxu0 0.0
    %992 = vmatprep.subr.mxu0 0.0
    %993 = vmatpush1.msra.mxu0 0.0
    %994 = vmatprep.subr.mxu0 0.0
    %995 = vmatpush1.msra.mxu0 0.0
    %996 = vmatprep.subr.mxu0 0.0
    %997 = vmatpush1.msra.mxu0 0.0
    %998 = vmatprep.subr.mxu0 0.0
    %999 = vmatpush1.msra.mxu0 0.0
    %1000 = vmatprep.subr.mxu0 0.0
    %1001 = vmatpush1.msra.mxu0 0.0
    %1002 = vmatprep.subr.mxu0 0.0
    %1003 = vmatpush1.msra.mxu0 0.0
    %1004 = vmatprep.subr.mxu0 0.0
    %1005 = vmatpush1.msra.mxu0 0.0
    %1006 = vmatprep.subr.mxu0 0.0
    %1007 = vmatpush1.msra.mxu0 0.0
    %1008 = vmatprep.subr.mxu0 0.0
    %1009 = vmatpush1.msra.mxu0 0.0
    %1010 = vmatprep.mubr.f32.mxu0 0.0
    %1011 = vmatmul.mubr.f32.gmra.mrb[0].mxu0 %v944
    %v1012 = vpop.f32.mrb[0].mxu0
    %v1013 = vadd.f32 %v68, %v1012
    %v1014 = vpop.f32.mrb[0].mxu0
    %1015 = vdwg.mxu0
    %v1016 = vadd.f32 %v942, %v1013
    %v1017 = vxor.u32 %v1016, 2147483648
    %v1018 = vmul.f32 %v1017, 1.442695
    %v1019 = vpow.pop %v1018
    %v1020 = vadd.f32 %v1019, 1.0
    %v1021 = vrcp.pop %v1020
    %v1022 = vmul.f32 1.0, %v1021
    %1024 = vrot.lane.b32.xlu0 %v1013, 96
    %v1025 = vpop.permute.xlu0 %1024
    %v1027 = vmul.f32 %v1022, %v1025
    %1029 = vrot.lane.b32.xlu0 %v1027, 32
    %v1030 = vpop.permute.xlu0 %1029
    %v1032 = vadd.f32 %v942, %v1030
    %v1033 = vtanh.pop %v1032
    %v1034 = vmul.f32 %v1022, %v924
    %v1035 = vsub.f32 1.0, %v1022
    %1037 = vrot.lane.b32.xlu0 %v1033, 64
    %v1038 = vpop.permute.xlu0 %1037
    %v1040 = vmul.f32 %v1035, %v1038
    %v1041 = vadd.f32 %v1034, %v1040
    %v1042 = vsub.f32 %v1041, %v174
    %vm1043 = vcmp.gt.f32.partialorder %v1042, 0.0
    %v1044 = vsel %vm1043, 1.0, 0.0
    %v1045 = vmul.f32 %v1044, %v1041
    %v1046 = vmul.f32 %v1044, %v174
    %v1047 = vsub.f32 %v1041, %v1046
    %s1048 = scalar_select %p46, 1, 0
    %v1049 = vstv %s1048
    %vm1050 = vcmp.eq.s32.totalorder %v1049, 1
    %v1051 = vsel %vm1050, %v1041, %v1047
    %1053 = vrot.lane.b32.xlu0 %v1051, 32
    %v1054 = vpop.permute.xlu0 %1053
    %1057 = vrot.lane.b32.xlu0 %v1044, 64
    %v1058 = vpop.permute.xlu0 %1057
    %v1060 = vsel %vm70, %v1045, %v1054
    %v1061 = vsel %vm195, %v1060, %v1058
    %v1062 = vsel %vm197, %v1061, %v192
    %v1063 = vsel %vm195, %v1016, %v1032
    %v1064 = vsel %vm197, %v1063, 0.0
    %s1065 = scalar_lea.vmem [#allocation10], 112
    %1066 = vst [vmem:[%s1065] sm:$0xff] %v1062
    %1067 = vst [vmem:[%s1065 + $0x8] sm:$0xff] %v1064
    %1068 = vst.msk [vmem:[#allocation2] sm:$0xff] %vm70, %v1045
    %1069 = vst.msk [vmem:[#allocation3] sm:$0xff] %vm70, %v1047
    %1070 = vst.msk [vmem:[#allocation4] sm:$0xff] %vm70, %v62
    // Predicated region
    $region30: #{tpu_custom_call.1} parent=1 // pred_check
      _
    $region31: #{tpu_custom_call.1} parent=1 // pred_check_branch
      %1072 = sbr.rel (0) target = $region33
    $region32: #{tpu_custom_call.1} parent=1 // pred_region
      %s1074 = ssub.s32 2048, 2048
      %1075 = vsyncadd [#allocation7], %s1074
      %s1076 = sshll.u32 [#allocation10], 4
      %s1077 = int_to_ptr.vmem [resolvable:$true] %s1076
      %1082 = dma.vmem_to_hbm [thread:$0]  %s1077, 2048, %s4, [#allocation7], 256, 256, 16
    $region33: #{tpu_custom_call.1} parent=1 // pred_fallthru
      _
    // Predicated region
    $region34: #{tpu_custom_call.1} parent=1 // pred_check
      _
    $region35: #{tpu_custom_call.1} parent=1 // pred_check_branch
      %1084 = sbr.rel (0) target = $region37
    $region36: #{tpu_custom_call.1} parent=1 // pred_region
      %1085 = dma.done [#allocation7], 2048
    $region37: #{tpu_custom_call.1} parent=1 // pred_fallthru
      _
    %1086 = vsyncpa [#allocation6], 1
    %1087 = vsyncpa [#allocation9], 1
    %1088 = vsyncpa [#allocation7], 1

</llo_original>
